<compile_context>
chip_gen: v6e
topology: v6e:2x2x1
jax: 0.10.0
libtpu: 0.0.40
codegen_flags: <defaults>
</compile_context>

<pallas_src>
import functools

import jax
import jax.numpy as jnp
from jax import lax
from jax.experimental import pallas as pl
from jax.experimental.pallas import tpu as pltpu


_G = 256  # node-axis tile granularity: multiple of 32 (int8 sublanes) and 128 (lanes)


def _round_up(x, m):
    return ((x + m - 1) // m) * m


def _pick_tile(n_pad, requested, prefer_split=False):
    """Largest multiple of _G that divides n_pad and is <= requested.

    With prefer_split, keep at least two tiles along the axis so the
    'parallel' dst dimension can shard across v7x's 2 TensorCores."""
    cap = max(_G, min(requested, n_pad))
    if prefer_split and n_pad >= 2 * _G:
        cap = min(cap, max(_G, n_pad // 2))
    best = _G
    m = _G
    while m <= cap:
        if n_pad % m == 0:
            best = m
        m += _G
    return best


# ---------------------------------------------------------------------------
# Pass 1: MaxK nonlinearity (keep top-k per row, zero the rest) -> bf16.
# ---------------------------------------------------------------------------
def _maxk_kernel(feat_ref, fs_ref, *, maxk, f_in):
    feat = feat_ref[...]                                    # [tm, F_pad] f32
    neg_inf = jnp.float32(-jnp.inf)
    # Mask lane padding out of the threshold search.
    col = lax.broadcasted_iota(jnp.int32, feat.shape, 1)
    masked = jnp.where(col < f_in, feat, neg_inf)

    # Find the k-th largest value per row by iteratively peeling off maxima.
    # TODO(synk): exact torch.topk tie-breaking (keep exactly k on duplicate
    # values) is not reproduced; identical for continuous inputs.
    init = jnp.full((feat.shape[0], 1), jnp.inf, dtype=jnp.float32)

    def peel(_, thresh):
        cand = jnp.where(masked < thresh, masked, neg_inf)
        return jnp.max(cand, axis=-1, keepdims=True)

    kth = lax.fori_loop(0, maxk, peel, init, unroll=True)   # [tm, 1]
    fs = jnp.where(masked >= kth, feat, 0.0)                # pad cols stay 0
    fs_ref[...] = fs.astype(fs_ref.dtype)                   # bf16 MXU feed


# ---------------------------------------------------------------------------
# Pass 2: neighbor aggregation (accumulated over src tiles) + GIN combine + MLP
# ---------------------------------------------------------------------------
def _gin_kernel(adj_ref, fs_ref, feat_ref, w1_ref, b1_ref, w2_ref, b2_ref,
                eps_ref, out_ref, acc_ref, *, tk, fs_resident):
    k = pl.program_id(1)

    @pl.when(k == 0)
    def _():
        acc_ref[...] = jnp.zeros_like(acc_ref)

    # int8 adjacency tile -> bf16 on the (otherwise idle) VALU, then
    # bf16 x bf16 on the MXU with f32 accumulation (exact for 0/1 edges).
    adj_tile = adj_ref[...].astype(jnp.bfloat16)
    if fs_resident:
        # fs is the whole (VMEM-resident) array; slice the current src window.
        src0 = pl.multiple_of(k * tk, tk)
        fs_tile = fs_ref[pl.ds(src0, tk), :]
    else:
        fs_tile = fs_ref[...]
    acc_ref[...] += jnp.dot(adj_tile, fs_tile,
                            preferred_element_type=jnp.float32)

    @pl.when(k == pl.num_programs(1) - 1)
    def _():
        eps = eps_ref[0]
        h = (1.0 + eps) * feat_ref[...] + acc_ref[...]       # [tm, F_pad] f32
        # bf16 operands / f32 accumulation for the MLP (no emulated f32 matmul).
        h1 = jnp.dot(h.astype(jnp.bfloat16), w1_ref[...],
                     preferred_element_type=jnp.float32) + b1_ref[...]
        h1 = jnp.maximum(h1, 0.0)
        out = jnp.dot(h1.astype(jnp.bfloat16), w2_ref[...],
                      preferred_element_type=jnp.float32) + b2_ref[...]
        out_ref[...] = out.astype(out_ref.dtype)             # lane-dense store


def maxk_gin_conv(adj, feat, params, *, maxk, tm=512, tk=1024, tm_sparse=1024,
                  fs_resident_budget_bytes=16 << 20):
    """MaxK-GIN forward.

    adj : [N, N] int8 adjacency (dst rows, src cols; 0/1).  Provide it as int8
          upstream — casting here would re-stream the whole N^2 array.
    feat: [N, F] float features.
    """
    n, f_in = feat.shape
    d_out = params["w1"].shape[0]
    assert maxk <= f_in
    assert adj.shape == (n, n)

    f_pad = _round_up(max(f_in, 128), 128)
    d_pad = _round_up(max(d_out, 128), 128)
    n_pad = _round_up(n, _G)

    tm = _pick_tile(n_pad, tm, prefer_split=True)      # dst-row tile
    tk = _pick_tile(n_pad, tk)                         # src-reduction tile
    tm_sparse = _pick_tile(n_pad, tm_sparse)           # MaxK pass tile

    if adj.dtype != jnp.int8:
        # TODO(synk): weighted adjacency needs a bf16/f32 path; int8 is exact
        # only for unweighted 0/1 graphs.  Prefer providing int8 upstream.
        adj = adj.astype(jnp.int8)
    if n_pad != n:
        adj = jnp.pad(adj, ((0, n_pad - n), (0, n_pad - n)))

    feat_p = feat.astype(jnp.float32)
    if (n_pad != n) or (f_pad != f_in):
        feat_p = jnp.pad(feat_p, ((0, n_pad - n), (0, f_pad - f_in)))

    # Lane-dense (128-multiple) zero padding; bf16 weights for the MXU.
    w1t = jnp.pad(params["w1"].T,
                  ((0, f_pad - f_in), (0, d_pad - d_out))).astype(jnp.bfloat16)
    w2t = jnp.pad(params["w2"].T,
                  ((0, d_pad - d_out), (0, d_pad - d_out))).astype(jnp.bfloat16)
    b1 = jnp.pad(params["b1"], (0, d_pad - d_out)).reshape(1, d_pad)
    b1 = b1.astype(jnp.float32)
    b2 = jnp.pad(params["b2"], (0, d_pad - d_out)).reshape(1, d_pad)
    b2 = b2.astype(jnp.float32)
    eps = params["eps"].reshape(1).astype(jnp.float32)

    # ---- Pass 1: materialize feat_sparse once (bf16, lane-padded) ----------
    fs = pl.pallas_call(
        functools.partial(_maxk_kernel, maxk=maxk, f_in=f_in),
        out_shape=jax.ShapeDtypeStruct((n_pad, f_pad), jnp.bfloat16),
        grid_spec=pltpu.PrefetchScalarGridSpec(
            num_scalar_prefetch=0,
            grid=(n_pad // tm_sparse,),
            in_specs=[pl.BlockSpec((tm_sparse, f_pad), lambda i: (i, 0))],
            out_specs=pl.BlockSpec((tm_sparse, f_pad), lambda i: (i, 0))),
        compiler_params=pltpu.CompilerParams(
            dimension_semantics=("parallel",)),
    )(feat_p)

    # feat_sparse residency: constant-index full-array block => DMA'd exactly
    # once for the whole kernel, instead of re-streamed per dst tile.
    fs_bytes = n_pad * f_pad * 2
    fs_resident = (2 * fs_bytes) <= fs_resident_budget_bytes  # double-buffered
    if fs_resident:
        fs_spec = pl.BlockSpec((n_pad, f_pad), lambda i, k: (0, 0))
    else:
        fs_spec = pl.BlockSpec((tk, f_pad), lambda i, k: (k, 0))

    fs_read_bytes = fs_bytes if fs_resident else fs_bytes * (n_pad // tm)
    cost = pl.CostEstimate(
        flops=(2 * n_pad * n_pad * f_pad
               + 2 * n_pad * f_pad * d_pad
               + 2 * n_pad * d_pad * d_pad),
        transcendentals=0,
        bytes_accessed=(n_pad * n_pad * 1                 # adj (int8)
                        + fs_read_bytes                   # feat_sparse (bf16)
                        + n_pad * f_pad * 4               # feat (f32, self)
                        + n_pad * d_pad * 4               # output (f32)
                        + (f_pad * d_pad + d_pad * d_pad) * 2   # weights bf16
                        + 2 * d_pad * 4))                 # biases

    # ---- Pass 2: tiled aggregation + GIN combine + MLP ----------------------
    out_pad = pl.pallas_call(
        functools.partial(_gin_kernel, tk=tk, fs_resident=fs_resident),
        out_shape=jax.ShapeDtypeStruct((n_pad, d_pad), jnp.float32),
        grid_spec=pltpu.PrefetchScalarGridSpec(
            num_scalar_prefetch=0,
            grid=(n_pad // tm, n_pad // tk),              # (dst rows, src reduce)
            in_specs=[
                pl.BlockSpec((tm, tk), lambda i, k: (i, k)),        # adj (int8)
                fs_spec,                                            # feat_sparse
                pl.BlockSpec((tm, f_pad), lambda i, k: (i, 0)),     # feat (self)
                pl.BlockSpec((f_pad, d_pad), lambda i, k: (0, 0)),  # W1^T (bf16)
                pl.BlockSpec((1, d_pad), lambda i, k: (0, 0)),      # b1
                pl.BlockSpec((d_pad, d_pad), lambda i, k: (0, 0)),  # W2^T (bf16)
                pl.BlockSpec((1, d_pad), lambda i, k: (0, 0)),      # b2
                pl.BlockSpec(memory_space=pltpu.MemorySpace.SMEM),  # eps
            ],
            out_specs=pl.BlockSpec((tm, d_pad), lambda i, k: (i, 0)),
            scratch_shapes=[pltpu.VMEM((tm, f_pad), jnp.float32)]),
        compiler_params=pltpu.CompilerParams(
            dimension_semantics=("parallel", "arbitrary"),
            vmem_limit_bytes=48 * 1024 * 1024),
        cost_estimate=cost,
    )(adj, fs, feat_p, w1t, b1, w2t, b2, eps)

    return out_pad[:n, :d_out]


def _init_params(key, in_feats, out_feats):
    """Deterministic parameter init mirroring the PyTorch module."""
    k1, k2, k3, k4 = jax.random.split(key, 4)

    def xavier_uniform(k, fan_out, fan_in):
        a = (6.0 / (fan_in + fan_out)) ** 0.5
        return jax.random.uniform(k, (fan_out, fan_in), jnp.float32, -a, a)

    def linear_bias(k, fan_in, fan_out):
        bound = 1.0 / (fan_in ** 0.5)
        return jax.random.uniform(k, (fan_out,), jnp.float32, -bound, bound)

    return {
        "w1": xavier_uniform(k1, out_feats, in_feats),
        "b1": linear_bias(k2, in_feats, out_feats),
        "w2": xavier_uniform(k3, out_feats, out_feats),
        "b2": linear_bias(k4, out_feats, out_feats),
        "eps": jnp.zeros((1,), jnp.float32),     # learn_eps=True, init 0
    }


def _reference(adj, feat, params, maxk):
    """Pure-JAX reference mirroring the kernel's precision choices
    (bf16 feat_sparse, int8->f32 adjacency, bf16 MLP operands, f32 accum)."""
    kth = lax.top_k(feat, maxk)[0][:, -1:]
    fs = jnp.where(feat >= kth, feat, 0.0)
    fs = fs.astype(jnp.bfloat16).astype(jnp.float32)
    a = adj.astype(jnp.float32)                           # 0/1, exact
    neigh = jnp.dot(a, fs, precision=lax.Precision.HIGHEST)
    h = (1.0 + params["eps"][0]) * feat + neigh
    h = h.astype(jnp.bfloat16).astype(jnp.float32)
    w1 = params["w1"].astype(jnp.bfloat16).astype(jnp.float32)
    w2 = params["w2"].astype(jnp.bfloat16).astype(jnp.float32)
    h1 = jnp.maximum(
        jnp.dot(h, w1.T, precision=lax.Precision.HIGHEST) + params["b1"], 0.0)
    h1 = h1.astype(jnp.bfloat16).astype(jnp.float32)
    return jnp.dot(h1, w2.T, precision=lax.Precision.HIGHEST) + params["b2"]


if __name__ == "__main__":
    N, IN_FEATS, OUT_FEATS, MAXK = 512, 32, 32, 8

    key = jax.random.PRNGKey(0)
    k_feat, k_adj, k_params = jax.random.split(key, 3)

    feat = jax.random.normal(k_feat, (N, IN_FEATS), jnp.float32)
    # Synthetic unweighted random graph, produced directly in the compact int8
    # dtype the kernel consumes (no per-call f32 cast of the N^2 stream).
    adj = (jax.random.uniform(k_adj, (N, N)) < 0.05).astype(jnp.int8)
    params = _init_params(k_params, IN_FEATS, OUT_FEATS)

    out = maxk_gin_conv(adj, feat, params, maxk=MAXK)
    out = jax.block_until_ready(out)

    ref = _reference(adj, feat, params, MAXK)
    assert out.shape == (N, OUT_FEATS)
    err = float(jnp.max(jnp.abs(out - ref)))
    assert jnp.allclose(out, ref, atol=2e-2, rtol=2e-2), err

    print("KERNEL_OK")
</pallas_src>

<mosaic_0001>
module attributes {stable_mosaic.version = 11 : i64} {
  func.func @_maxk_kernel(%arg0: i32, %arg1: memref<512x128xf32, #tpu.memory_space<vmem>>, %arg2: memref<512x128xbf16, #tpu.memory_space<vmem>>) attributes {dimension_semantics = [#tpu.dimension_semantics<parallel>], iteration_bounds = array<i64: 1>, scalar_prefetch = 0 : i64, scratch_operands = 0 : i64, tpu.core_type = #tpu.core_type<tc>, window_params = [{transform_indices = @transform_0, window_bounds = array<i64: 512, 128>}, {transform_indices = @transform_1, window_bounds = array<i64: 512, 128>}]} {
    %c0 = arith.constant 0 : index
    %c0_0 = arith.constant 0 : index
    %0 = vector.load %arg1[%c0, %c0_0] : memref<512x128xf32, #tpu.memory_space<vmem>>, vector<512x128xf32>
    %1 = tpu.iota {dimensions = array<i32: 1>} : vector<512x128xi32>
    %c32_i32 = arith.constant 32 : i32
    %2 = vector.broadcast %c32_i32 : i32 to vector<512x128xi32>
    %3 = arith.cmpi slt, %1, %2 : vector<512x128xi32>
    %cst = arith.constant 0xFF800000 : f32
    %4 = vector.broadcast %cst : f32 to vector<512x128xf32>
    %5 = arith.select %3, %0, %4 : vector<512x128xi1>, vector<512x128xf32>
    %cst_1 = arith.constant 0x7F800000 : f32
    %6 = vector.broadcast %cst_1 : f32 to vector<512x1xf32>
    %cst_2 = arith.constant 0xFF800000 : f32
    %c0_i32 = arith.constant 0 : i32
    %7 = vector.broadcast %6 : vector<512x1xf32> to vector<512x128xf32>
    %8 = arith.cmpf olt, %5, %7 : vector<512x128xf32>
    %9 = vector.broadcast %cst_2 : f32 to vector<512x128xf32>
    %10 = arith.select %8, %5, %9 : vector<512x128xi1>, vector<512x128xf32>
    %cst_3 = arith.constant dense<0xFF800000> : vector<512xf32>
    %11 = vector.multi_reduction <maximumf>, %10, %cst_3 [1] : vector<512x128xf32> to vector<512xf32>
    %12 = vector.shape_cast %11 : vector<512xf32> to vector<512x1xf32>
    %c1_i32 = arith.constant 1 : i32
    %13 = vector.broadcast %12 : vector<512x1xf32> to vector<512x128xf32>
    %14 = arith.cmpf olt, %5, %13 : vector<512x128xf32>
    %15 = vector.broadcast %cst_2 : f32 to vector<512x128xf32>
    %16 = arith.select %14, %5, %15 : vector<512x128xi1>, vector<512x128xf32>
    %cst_4 = arith.constant dense<0xFF800000> : vector<512xf32>
    %17 = vector.multi_reduction <maximumf>, %16, %cst_4 [1] : vector<512x128xf32> to vector<512xf32>
    %18 = vector.shape_cast %17 : vector<512xf32> to vector<512x1xf32>
    %c2_i32 = arith.constant 2 : i32
    %19 = vector.broadcast %18 : vector<512x1xf32> to vector<512x128xf32>
    %20 = arith.cmpf olt, %5, %19 : vector<512x128xf32>
    %21 = vector.broadcast %cst_2 : f32 to vector<512x128xf32>
    %22 = arith.select %20, %5, %21 : vector<512x128xi1>, vector<512x128xf32>
    %cst_5 = arith.constant dense<0xFF800000> : vector<512xf32>
    %23 = vector.multi_reduction <maximumf>, %22, %cst_5 [1] : vector<512x128xf32> to vector<512xf32>
    %24 = vector.shape_cast %23 : vector<512xf32> to vector<512x1xf32>
    %c3_i32 = arith.constant 3 : i32
    %25 = vector.broadcast %24 : vector<512x1xf32> to vector<512x128xf32>
    %26 = arith.cmpf olt, %5, %25 : vector<512x128xf32>
    %27 = vector.broadcast %cst_2 : f32 to vector<512x128xf32>
    %28 = arith.select %26, %5, %27 : vector<512x128xi1>, vector<512x128xf32>
    %cst_6 = arith.constant dense<0xFF800000> : vector<512xf32>
    %29 = vector.multi_reduction <maximumf>, %28, %cst_6 [1] : vector<512x128xf32> to vector<512xf32>
    %30 = vector.shape_cast %29 : vector<512xf32> to vector<512x1xf32>
    %c4_i32 = arith.constant 4 : i32
    %31 = vector.broadcast %30 : vector<512x1xf32> to vector<512x128xf32>
    %32 = arith.cmpf olt, %5, %31 : vector<512x128xf32>
    %33 = vector.broadcast %cst_2 : f32 to vector<512x128xf32>
    %34 = arith.select %32, %5, %33 : vector<512x128xi1>, vector<512x128xf32>
    %cst_7 = arith.constant dense<0xFF800000> : vector<512xf32>
    %35 = vector.multi_reduction <maximumf>, %34, %cst_7 [1] : vector<512x128xf32> to vector<512xf32>
    %36 = vector.shape_cast %35 : vector<512xf32> to vector<512x1xf32>
    %c5_i32 = arith.constant 5 : i32
    %37 = vector.broadcast %36 : vector<512x1xf32> to vector<512x128xf32>
    %38 = arith.cmpf olt, %5, %37 : vector<512x128xf32>
    %39 = vector.broadcast %cst_2 : f32 to vector<512x128xf32>
    %40 = arith.select %38, %5, %39 : vector<512x128xi1>, vector<512x128xf32>
    %cst_8 = arith.constant dense<0xFF800000> : vector<512xf32>
    %41 = vector.multi_reduction <maximumf>, %40, %cst_8 [1] : vector<512x128xf32> to vector<512xf32>
    %42 = vector.shape_cast %41 : vector<512xf32> to vector<512x1xf32>
    %c6_i32 = arith.constant 6 : i32
    %43 = vector.broadcast %42 : vector<512x1xf32> to vector<512x128xf32>
    %44 = arith.cmpf olt, %5, %43 : vector<512x128xf32>
    %45 = vector.broadcast %cst_2 : f32 to vector<512x128xf32>
    %46 = arith.select %44, %5, %45 : vector<512x128xi1>, vector<512x128xf32>
    %cst_9 = arith.constant dense<0xFF800000> : vector<512xf32>
    %47 = vector.multi_reduction <maximumf>, %46, %cst_9 [1] : vector<512x128xf32> to vector<512xf32>
    %48 = vector.shape_cast %47 : vector<512xf32> to vector<512x1xf32>
    %c7_i32 = arith.constant 7 : i32
    %49 = vector.broadcast %48 : vector<512x1xf32> to vector<512x128xf32>
    %50 = arith.cmpf olt, %5, %49 : vector<512x128xf32>
    %51 = vector.broadcast %cst_2 : f32 to vector<512x128xf32>
    %52 = arith.select %50, %5, %51 : vector<512x128xi1>, vector<512x128xf32>
    %cst_10 = arith.constant dense<0xFF800000> : vector<512xf32>
    %53 = vector.multi_reduction <maximumf>, %52, %cst_10 [1] : vector<512x128xf32> to vector<512xf32>
    %54 = vector.shape_cast %53 : vector<512xf32> to vector<512x1xf32>
    %55 = vector.broadcast %54 : vector<512x1xf32> to vector<512x128xf32>
    %56 = arith.cmpf oge, %5, %55 : vector<512x128xf32>
    %cst_11 = arith.constant 0.000000e+00 : f32
    %57 = vector.broadcast %cst_11 : f32 to vector<512x128xf32>
    %58 = arith.select %56, %0, %57 : vector<512x128xi1>, vector<512x128xf32>
    %59 = arith.truncf %58 : vector<512x128xf32> to vector<512x128xbf16>
    %c0_12 = arith.constant 0 : index
    %c0_13 = arith.constant 0 : index
    %60 = vector.load %arg2[%c0_12, %c0_13] : memref<512x128xbf16, #tpu.memory_space<vmem>>, vector<512x128xbf16>
    tpu.vector_store %arg2[%c0_12, %c0_13], %59 {strides = array<i32>} : memref<512x128xbf16, #tpu.memory_space<vmem>>, vector<512x128xbf16>,
    return
  }
  func.func @transform_0(%arg0: i32) -> (i32, i32) {
    %c0_i32 = arith.constant 0 : i32
    %c0_i32_0 = arith.constant 0 : i32
    return %arg0, %c0_i32 : i32, i32
  }
  func.func @transform_1(%arg0: i32) -> (i32, i32) {
    %c0_i32 = arith.constant 0 : i32
    %c0_i32_0 = arith.constant 0 : i32
    return %arg0, %c0_i32 : i32, i32
  }
}

</mosaic_0001>

<llo_original>
// kernel: tpu_custom_call.1
$region0: #{tpu_custom_call.1}
  #allocation0 [shape = 'u32[]', space=smem, size = 0x4, offset = 0x4, fixed_abs, tag = 'smem constant byte address 0x4 - core index']
  #allocation1 [shape = 'u32[144,128]{1,0:T(1,128)}', space=vmem, size = 0x12000, scoped, tag = 'internal scratch']
  %s0 = inlined_call_operand.hbm [shape: f32[512,128], index: 0, kind: input, shape index: {}]
  %s1 = inlined_call_operand.hbm [shape: bf16[512,128], index: 1, kind: output, shape index: {}]
  %s2 = sld [smem:[#allocation0]]
  $region18: #{tpu_custom_call.1} parent=0
    _
  %s4 = ssub.s32 1, %s2
  %s5 = scalar_select 0, %s4, %s2
  $region1: #{tpu_custom_call.1} parent=0
    #allocation2 [shape = 'u8[262144]{0}', space=vmem, size = 0x40000, scoped, tag = 'input window, operand 0, single buffered']
    #allocation3 [shape = 's32[1]{0}', space=sflag, size = 0x4, scoped, tag = 'scoped memory for tpu_custom_call.1']
    #allocation4 [shape = 's32[1]{0}', space=sflag, size = 0x4, scoped, tag = 'scoped memory for tpu_custom_call.1']
    #allocation5 [shape = 'u8[131072]{0}', space=vmem, size = 0x20000, scoped, tag = 'output window, operand 0, single buffered']
    %6 = vsyncpa [#allocation3], 0
    %7 = vsyncpa [#allocation4], 0
    // Predicated region
    $region2: #{tpu_custom_call.1} parent=1 // pred_check
      _
    $region3: #{tpu_custom_call.1} parent=1 // pred_check_branch
      %9 = sbr.rel (0) target = $region5
    $region4: #{tpu_custom_call.1} parent=1 // pred_region
      %s11 = ssub.s32 8192, 8192
      %12 = vsyncadd [#allocation3], %s11
      %s13 = sshll.u32 [#allocation2], 4
      %s14 = int_to_ptr.vmem [resolvable:$true] %s13
      %19 = dma.hbm_to_vmem [thread:$0]  %s0, 8192, %s14, [#allocation3], 128, 128, 8
    $region5: #{tpu_custom_call.1} parent=1 // pred_fallthru
      _
    // Predicated region
    $region6: #{tpu_custom_call.1} parent=1 // pred_check
      _
    $region7: #{tpu_custom_call.1} parent=1 // pred_check_branch
      %21 = sbr.rel (0) target = $region9
    $region8: #{tpu_custom_call.1} parent=1 // pred_region
      %22 = dma.done [#allocation3], 8192
    $region9: #{tpu_custom_call.1} parent=1 // pred_fallthru
      _
    %v23 = vld [vmem:[#allocation2] sm:$0xff]
    %v24 = vld [vmem:[#allocation2 + $0x8] sm:$0xff]
    %v25 = vld [vmem:[#allocation2 + $0x10] sm:$0xff]
    %v26 = vld [vmem:[#allocation2 + $0x18] sm:$0xff]
    %v27 = vld [vmem:[#allocation2 + $0x20] sm:$0xff]
    %v28 = vld [vmem:[#allocation2 + $0x28] sm:$0xff]
    %v29 = vld [vmem:[#allocation2 + $0x30] sm:$0xff]
    %v30 = vld [vmem:[#allocation2 + $0x38] sm:$0xff]
    %v31 = vld [vmem:[#allocation2 + $0x40] sm:$0xff]
    %v32 = vld [vmem:[#allocation2 + $0x48] sm:$0xff]
    %v33 = vld [vmem:[#allocation2 + $0x50] sm:$0xff]
    %v34 = vld [vmem:[#allocation2 + $0x58] sm:$0xff]
    %v35 = vld [vmem:[#allocation2 + $0x60] sm:$0xff]
    %v36 = vld [vmem:[#allocation2 + $0x68] sm:$0xff]
    %v37 = vld [vmem:[#allocation2 + $0x70] sm:$0xff]
    %v38 = vld [vmem:[#allocation2 + $0x78] sm:$0xff]
    %v39 = vld [vmem:[#allocation2 + $0x80] sm:$0xff]
    %v40 = vld [vmem:[#allocation2 + $0x88] sm:$0xff]
    %v41 = vld [vmem:[#allocation2 + $0x90] sm:$0xff]
    %v42 = vld [vmem:[#allocation2 + $0x98] sm:$0xff]
    %v43 = vld [vmem:[#allocation2 + $0xa0] sm:$0xff]
    %v44 = vld [vmem:[#allocation2 + $0xa8] sm:$0xff]
    %v45 = vld [vmem:[#allocation2 + $0xb0] sm:$0xff]
    %v46 = vld [vmem:[#allocation2 + $0xb8] sm:$0xff]
    %v47 = vld [vmem:[#allocation2 + $0xc0] sm:$0xff]
    %v48 = vld [vmem:[#allocation2 + $0xc8] sm:$0xff]
    %v49 = vld [vmem:[#allocation2 + $0xd0] sm:$0xff]
    %v50 = vld [vmem:[#allocation2 + $0xd8] sm:$0xff]
    %v51 = vld [vmem:[#allocation2 + $0xe0] sm:$0xff]
    %v52 = vld [vmem:[#allocation2 + $0xe8] sm:$0xff]
    %v53 = vld [vmem:[#allocation2 + $0xf0] sm:$0xff]
    %v54 = vld [vmem:[#allocation2 + $0xf8] sm:$0xff]
    %v55 = vld [vmem:[#allocation2 + $0x100] sm:$0xff]
    %v56 = vld [vmem:[#allocation2 + $0x108] sm:$0xff]
    %v57 = vld [vmem:[#allocation2 + $0x110] sm:$0xff]
    %v58 = vld [vmem:[#allocation2 + $0x118] sm:$0xff]
    %v59 = vld [vmem:[#allocation2 + $0x120] sm:$0xff]
    %v60 = vld [vmem:[#allocation2 + $0x128] sm:$0xff]
    %v61 = vld [vmem:[#allocation2 + $0x130] sm:$0xff]
    %v62 = vld [vmem:[#allocation2 + $0x138] sm:$0xff]
    %v63 = vld [vmem:[#allocation2 + $0x140] sm:$0xff]
    %v64 = vld [vmem:[#allocation2 + $0x148] sm:$0xff]
    %v65 = vld [vmem:[#allocation2 + $0x150] sm:$0xff]
    %v66 = vld [vmem:[#allocation2 + $0x158] sm:$0xff]
    %v67 = vld [vmem:[#allocation2 + $0x160] sm:$0xff]
    %v68 = vld [vmem:[#allocation2 + $0x168] sm:$0xff]
    %v69 = vld [vmem:[#allocation2 + $0x170] sm:$0xff]
    %v70 = vld [vmem:[#allocation2 + $0x178] sm:$0xff]
    %v71 = vld [vmem:[#allocation2 + $0x180] sm:$0xff]
    %v72 = vld [vmem:[#allocation2 + $0x188] sm:$0xff]
    %v73 = vld [vmem:[#allocation2 + $0x190] sm:$0xff]
    %v74 = vld [vmem:[#allocation2 + $0x198] sm:$0xff]
    %v75 = vld [vmem:[#allocation2 + $0x1a0] sm:$0xff]
    %v76 = vld [vmem:[#allocation2 + $0x1a8] sm:$0xff]
    %v77 = vld [vmem:[#allocation2 + $0x1b0] sm:$0xff]
    %v78 = vld [vmem:[#allocation2 + $0x1b8] sm:$0xff]
    %v79 = vld [vmem:[#allocation2 + $0x1c0] sm:$0xff]
    %v80 = vld [vmem:[#allocation2 + $0x1c8] sm:$0xff]
    %v81 = vld [vmem:[#allocation2 + $0x1d0] sm:$0xff]
    %v82 = vld [vmem:[#allocation2 + $0x1d8] sm:$0xff]
    %v83 = vld [vmem:[#allocation2 + $0x1e0] sm:$0xff]
    %v84 = vld [vmem:[#allocation2 + $0x1e8] sm:$0xff]
    %v85 = vld [vmem:[#allocation2 + $0x1f0] sm:$0xff]
    %v86 = vld [vmem:[#allocation2 + $0x1f8] sm:$0xff]
    %v87 = vlaneseq
    %v88 = vand.u32 %v87, 127
    %vm89 = vcmp.lt.s32.totalorder %v88, 32
    %v90 = vsel %vm89, %v23, -inf
    %v91 = vsel %vm89, %v24, -inf
    %v92 = vsel %vm89, %v25, -inf
    %v93 = vsel %vm89, %v26, -inf
    %v94 = vsel %vm89, %v27, -inf
    %v95 = vsel %vm89, %v28, -inf
    %v96 = vsel %vm89, %v29, -inf
    %v97 = vsel %vm89, %v30, -inf
    %v98 = vsel %vm89, %v31, -inf
    %v99 = vsel %vm89, %v32, -inf
    %v100 = vsel %vm89, %v33, -inf
    %v101 = vsel %vm89, %v34, -inf
    %v102 = vsel %vm89, %v35, -inf
    %v103 = vsel %vm89, %v36, -inf
    %v104 = vsel %vm89, %v37, -inf
    %v105 = vsel %vm89, %v38, -inf
    %v106 = vsel %vm89, %v39, -inf
    %v107 = vsel %vm89, %v40, -inf
    %v108 = vsel %vm89, %v41, -inf
    %v109 = vsel %vm89, %v42, -inf
    %v110 = vsel %vm89, %v43, -inf
    %v111 = vsel %vm89, %v44, -inf
    %v112 = vsel %vm89, %v45, -inf
    %v113 = vsel %vm89, %v46, -inf
    %v114 = vsel %vm89, %v47, -inf
    %v115 = vsel %vm89, %v48, -inf
    %v116 = vsel %vm89, %v49, -inf
    %v117 = vsel %vm89, %v50, -inf
    %v118 = vsel %vm89, %v51, -inf
    %v119 = vsel %vm89, %v52, -inf
    %v120 = vsel %vm89, %v53, -inf
    %v121 = vsel %vm89, %v54, -inf
    %v122 = vsel %vm89, %v55, -inf
    %v123 = vsel %vm89, %v56, -inf
    %v124 = vsel %vm89, %v57, -inf
    %v125 = vsel %vm89, %v58, -inf
    %v126 = vsel %vm89, %v59, -inf
    %v127 = vsel %vm89, %v60, -inf
    %v128 = vsel %vm89, %v61, -inf
    %v129 = vsel %vm89, %v62, -inf
    %v130 = vsel %vm89, %v63, -inf
    %v131 = vsel %vm89, %v64, -inf
    %v132 = vsel %vm89, %v65, -inf
    %v133 = vsel %vm89, %v66, -inf
    %v134 = vsel %vm89, %v67, -inf
    %v135 = vsel %vm89, %v68, -inf
    %v136 = vsel %vm89, %v69, -inf
    %v137 = vsel %vm89, %v70, -inf
    %v138 = vsel %vm89, %v71, -inf
    %v139 = vsel %vm89, %v72, -inf
    %v140 = vsel %vm89, %v73, -inf
    %v141 = vsel %vm89, %v74, -inf
    %v142 = vsel %vm89, %v75, -inf
    %v143 = vsel %vm89, %v76, -inf
    %v144 = vsel %vm89, %v77, -inf
    %v145 = vsel %vm89, %v78, -inf
    %v146 = vsel %vm89, %v79, -inf
    %v147 = vsel %vm89, %v80, -inf
    %v148 = vsel %vm89, %v81, -inf
    %v149 = vsel %vm89, %v82, -inf
    %v150 = vsel %vm89, %v83, -inf
    %v151 = vsel %vm89, %v84, -inf
    %v152 = vsel %vm89, %v85, -inf
    %v153 = vsel %vm89, %v86, -inf
    %vm154 = vcmp.lt.f32.partialorder %v90, inf
    %vm155 = vcmp.lt.f32.partialorder %v91, inf
    %vm156 = vcmp.lt.f32.partialorder %v92, inf
    %vm157 = vcmp.lt.f32.partialorder %v93, inf
    %vm158 = vcmp.lt.f32.partialorder %v94, inf
    %vm159 = vcmp.lt.f32.partialorder %v95, inf
    %vm160 = vcmp.lt.f32.partialorder %v96, inf
    %vm161 = vcmp.lt.f32.partialorder %v97, inf
    %vm162 = vcmp.lt.f32.partialorder %v98, inf
    %vm163 = vcmp.lt.f32.partialorder %v99, inf
    %vm164 = vcmp.lt.f32.partialorder %v100, inf
    %vm165 = vcmp.lt.f32.partialorder %v101, inf
    %vm166 = vcmp.lt.f32.partialorder %v102, inf
    %vm167 = vcmp.lt.f32.partialorder %v103, inf
    %vm168 = vcmp.lt.f32.partialorder %v104, inf
    %vm169 = vcmp.lt.f32.partialorder %v105, inf
    %vm170 = vcmp.lt.f32.partialorder %v106, inf
    %vm171 = vcmp.lt.f32.partialorder %v107, inf
    %vm172 = vcmp.lt.f32.partialorder %v108, inf
    %vm173 = vcmp.lt.f32.partialorder %v109, inf
    %vm174 = vcmp.lt.f32.partialorder %v110, inf
    %vm175 = vcmp.lt.f32.partialorder %v111, inf
    %vm176 = vcmp.lt.f32.partialorder %v112, inf
    %vm177 = vcmp.lt.f32.partialorder %v113, inf
    %vm178 = vcmp.lt.f32.partialorder %v114, inf
    %vm179 = vcmp.lt.f32.partialorder %v115, inf
    %vm180 = vcmp.lt.f32.partialorder %v116, inf
    %vm181 = vcmp.lt.f32.partialorder %v117, inf
    %vm182 = vcmp.lt.f32.partialorder %v118, inf
    %vm183 = vcmp.lt.f32.partialorder %v119, inf
    %vm184 = vcmp.lt.f32.partialorder %v120, inf
    %vm185 = vcmp.lt.f32.partialorder %v121, inf
    %vm186 = vcmp.lt.f32.partialorder %v122, inf
    %vm187 = vcmp.lt.f32.partialorder %v123, inf
    %vm188 = vcmp.lt.f32.partialorder %v124, inf
    %vm189 = vcmp.lt.f32.partialorder %v125, inf
    %vm190 = vcmp.lt.f32.partialorder %v126, inf
    %vm191 = vcmp.lt.f32.partialorder %v127, inf
    %vm192 = vcmp.lt.f32.partialorder %v128, inf
    %vm193 = vcmp.lt.f32.partialorder %v129, inf
    %vm194 = vcmp.lt.f32.partialorder %v130, inf
    %vm195 = vcmp.lt.f32.partialorder %v131, inf
    %vm196 = vcmp.lt.f32.partialorder %v132, inf
    %vm197 = vcmp.lt.f32.partialorder %v133, inf
    %vm198 = vcmp.lt.f32.partialorder %v134, inf
    %vm199 = vcmp.lt.f32.partialorder %v135, inf
    %vm200 = vcmp.lt.f32.partialorder %v136, inf
    %vm201 = vcmp.lt.f32.partialorder %v137, inf
    %vm202 = vcmp.lt.f32.partialorder %v138, inf
    %vm203 = vcmp.lt.f32.partialorder %v139, inf
    %vm204 = vcmp.lt.f32.partialorder %v140, inf
    %vm205 = vcmp.lt.f32.partialorder %v141, inf
    %vm206 = vcmp.lt.f32.partialorder %v142, inf
    %vm207 = vcmp.lt.f32.partialorder %v143, inf
    %vm208 = vcmp.lt.f32.partialorder %v144, inf
    %vm209 = vcmp.lt.f32.partialorder %v145, inf
    %vm210 = vcmp.lt.f32.partialorder %v146, inf
    %vm211 = vcmp.lt.f32.partialorder %v147, inf
    %vm212 = vcmp.lt.f32.partialorder %v148, inf
    %vm213 = vcmp.lt.f32.partialorder %v149, inf
    %vm214 = vcmp.lt.f32.partialorder %v150, inf
    %vm215 = vcmp.lt.f32.partialorder %v151, inf
    %vm216 = vcmp.lt.f32.partialorder %v152, inf
    %vm217 = vcmp.lt.f32.partialorder %v153, inf
    %v218 = vsel %vm154, %v90, -inf
    %v219 = vsel %vm155, %v91, -inf
    %v220 = vsel %vm156, %v92, -inf
    %v221 = vsel %vm157, %v93, -inf
    %v222 = vsel %vm158, %v94, -inf
    %v223 = vsel %vm159, %v95, -inf
    %v224 = vsel %vm160, %v96, -inf
    %v225 = vsel %vm161, %v97, -inf
    %v226 = vsel %vm162, %v98, -inf
    %v227 = vsel %vm163, %v99, -inf
    %v228 = vsel %vm164, %v100, -inf
    %v229 = vsel %vm165, %v101, -inf
    %v230 = vsel %vm166, %v102, -inf
    %v231 = vsel %vm167, %v103, -inf
    %v232 = vsel %vm168, %v104, -inf
    %v233 = vsel %vm169, %v105, -inf
    %v234 = vsel %vm170, %v106, -inf
    %v235 = vsel %vm171, %v107, -inf
    %v236 = vsel %vm172, %v108, -inf
    %v237 = vsel %vm173, %v109, -inf
    %v238 = vsel %vm174, %v110, -inf
    %v239 = vsel %vm175, %v111, -inf
    %v240 = vsel %vm176, %v112, -inf
    %v241 = vsel %vm177, %v113, -inf
    %v242 = vsel %vm178, %v114, -inf
    %v243 = vsel %vm179, %v115, -inf
    %v244 = vsel %vm180, %v116, -inf
    %v245 = vsel %vm181, %v117, -inf
    %v246 = vsel %vm182, %v118, -inf
    %v247 = vsel %vm183, %v119, -inf
    %v248 = vsel %vm184, %v120, -inf
    %v249 = vsel %vm185, %v121, -inf
    %v250 = vsel %vm186, %v122, -inf
    %v251 = vsel %vm187, %v123, -inf
    %v252 = vsel %vm188, %v124, -inf
    %v253 = vsel %vm189, %v125, -inf
    %v254 = vsel %vm190, %v126, -inf
    %v255 = vsel %vm191, %v127, -inf
    %v256 = vsel %vm192, %v128, -inf
    %v257 = vsel %vm193, %v129, -inf
    %v258 = vsel %vm194, %v130, -inf
    %v259 = vsel %vm195, %v131, -inf
    %v260 = vsel %vm196, %v132, -inf
    %v261 = vsel %vm197, %v133, -inf
    %v262 = vsel %vm198, %v134, -inf
    %v263 = vsel %vm199, %v135, -inf
    %v264 = vsel %vm200, %v136, -inf
    %v265 = vsel %vm201, %v137, -inf
    %v266 = vsel %vm202, %v138, -inf
    %v267 = vsel %vm203, %v139, -inf
    %v268 = vsel %vm204, %v140, -inf
    %v269 = vsel %vm205, %v141, -inf
    %v270 = vsel %vm206, %v142, -inf
    %v271 = vsel %vm207, %v143, -inf
    %v272 = vsel %vm208, %v144, -inf
    %v273 = vsel %vm209, %v145, -inf
    %v274 = vsel %vm210, %v146, -inf
    %v275 = vsel %vm211, %v147, -inf
    %v276 = vsel %vm212, %v148, -inf
    %v277 = vsel %vm213, %v149, -inf
    %v278 = vsel %vm214, %v150, -inf
    %v279 = vsel %vm215, %v151, -inf
    %v280 = vsel %vm216, %v152, -inf
    %v281 = vsel %vm217, %v153, -inf
    %282 = vmax.xlane.f32.xlu0 %v218
    %v283 = vpop.xlane.xlu0 %282
    %284 = vmax.xlane.f32.xlu0 %v219
    %v285 = vpop.xlane.xlu0 %284
    %286 = vmax.xlane.f32.xlu0 %v220
    %v287 = vpop.xlane.xlu0 %286
    %288 = vmax.xlane.f32.xlu0 %v221
    %v289 = vpop.xlane.xlu0 %288
    %290 = vmax.xlane.f32.xlu0 %v222
    %v291 = vpop.xlane.xlu0 %290
    %292 = vmax.xlane.f32.xlu0 %v223
    %v293 = vpop.xlane.xlu0 %292
    %294 = vmax.xlane.f32.xlu0 %v224
    %v295 = vpop.xlane.xlu0 %294
    %296 = vmax.xlane.f32.xlu0 %v225
    %v297 = vpop.xlane.xlu0 %296
    %298 = vmax.xlane.f32.xlu0 %v226
    %v299 = vpop.xlane.xlu0 %298
    %300 = vmax.xlane.f32.xlu0 %v227
    %v301 = vpop.xlane.xlu0 %300
    %302 = vmax.xlane.f32.xlu0 %v228
    %v303 = vpop.xlane.xlu0 %302
    %304 = vmax.xlane.f32.xlu0 %v229
    %v305 = vpop.xlane.xlu0 %304
    %306 = vmax.xlane.f32.xlu0 %v230
    %v307 = vpop.xlane.xlu0 %306
    %308 = vmax.xlane.f32.xlu0 %v231
    %v309 = vpop.xlane.xlu0 %308
    %310 = vmax.xlane.f32.xlu0 %v232
    %v311 = vpop.xlane.xlu0 %310
    %312 = vmax.xlane.f32.xlu0 %v233
    %v313 = vpop.xlane.xlu0 %312
    %314 = vmax.xlane.f32.xlu0 %v234
    %v315 = vpop.xlane.xlu0 %314
    %316 = vmax.xlane.f32.xlu0 %v235
    %v317 = vpop.xlane.xlu0 %316
    %318 = vmax.xlane.f32.xlu0 %v236
    %v319 = vpop.xlane.xlu0 %318
    %320 = vmax.xlane.f32.xlu0 %v237
    %v321 = vpop.xlane.xlu0 %320
    %322 = vmax.xlane.f32.xlu0 %v238
    %v323 = vpop.xlane.xlu0 %322
    %324 = vmax.xlane.f32.xlu0 %v239
    %v325 = vpop.xlane.xlu0 %324
    %326 = vmax.xlane.f32.xlu0 %v240
    %v327 = vpop.xlane.xlu0 %326
    %328 = vmax.xlane.f32.xlu0 %v241
    %v329 = vpop.xlane.xlu0 %328
    %330 = vmax.xlane.f32.xlu0 %v242
    %v331 = vpop.xlane.xlu0 %330
    %332 = vmax.xlane.f32.xlu0 %v243
    %v333 = vpop.xlane.xlu0 %332
    %334 = vmax.xlane.f32.xlu0 %v244
    %v335 = vpop.xlane.xlu0 %334
    %336 = vmax.xlane.f32.xlu0 %v245
    %v337 = vpop.xlane.xlu0 %336
    %338 = vmax.xlane.f32.xlu0 %v246
    %v339 = vpop.xlane.xlu0 %338
    %340 = vmax.xlane.f32.xlu0 %v247
    %v341 = vpop.xlane.xlu0 %340
    %342 = vmax.xlane.f32.xlu0 %v248
    %v343 = vpop.xlane.xlu0 %342
    %344 = vmax.xlane.f32.xlu0 %v249
    %v345 = vpop.xlane.xlu0 %344
    %346 = vmax.xlane.f32.xlu0 %v250
    %v347 = vpop.xlane.xlu0 %346
    %348 = vmax.xlane.f32.xlu0 %v251
    %v349 = vpop.xlane.xlu0 %348
    %350 = vmax.xlane.f32.xlu0 %v252
    %v351 = vpop.xlane.xlu0 %350
    %352 = vmax.xlane.f32.xlu0 %v253
    %v353 = vpop.xlane.xlu0 %352
    %354 = vmax.xlane.f32.xlu0 %v254
    %v355 = vpop.xlane.xlu0 %354
    %356 = vmax.xlane.f32.xlu0 %v255
    %v357 = vpop.xlane.xlu0 %356
    %358 = vmax.xlane.f32.xlu0 %v256
    %v359 = vpop.xlane.xlu0 %358
    %360 = vmax.xlane.f32.xlu0 %v257
    %v361 = vpop.xlane.xlu0 %360
    %362 = vmax.xlane.f32.xlu0 %v258
    %v363 = vpop.xlane.xlu0 %362
    %364 = vmax.xlane.f32.xlu0 %v259
    %v365 = vpop.xlane.xlu0 %364
    %366 = vmax.xlane.f32.xlu0 %v260
    %v367 = vpop.xlane.xlu0 %366
    %368 = vmax.xlane.f32.xlu0 %v261
    %v369 = vpop.xlane.xlu0 %368
    %370 = vmax.xlane.f32.xlu0 %v262
    %v371 = vpop.xlane.xlu0 %370
    %372 = vmax.xlane.f32.xlu0 %v263
    %v373 = vpop.xlane.xlu0 %372
    %374 = vmax.xlane.f32.xlu0 %v264
    %v375 = vpop.xlane.xlu0 %374
    %376 = vmax.xlane.f32.xlu0 %v265
    %v377 = vpop.xlane.xlu0 %376
    %378 = vmax.xlane.f32.xlu0 %v266
    %v379 = vpop.xlane.xlu0 %378
    %380 = vmax.xlane.f32.xlu0 %v267
    %v381 = vpop.xlane.xlu0 %380
    %382 = vmax.xlane.f32.xlu0 %v268
    %v383 = vpop.xlane.xlu0 %382
    %384 = vmax.xlane.f32.xlu0 %v269
    %v385 = vpop.xlane.xlu0 %384
    %386 = vmax.xlane.f32.xlu0 %v270
    %v387 = vpop.xlane.xlu0 %386
    %388 = vmax.xlane.f32.xlu0 %v271
    %v389 = vpop.xlane.xlu0 %388
    %390 = vmax.xlane.f32.xlu0 %v272
    %v391 = vpop.xlane.xlu0 %390
    %392 = vmax.xlane.f32.xlu0 %v273
    %v393 = vpop.xlane.xlu0 %392
    %394 = vmax.xlane.f32.xlu0 %v274
    %v395 = vpop.xlane.xlu0 %394
    %396 = vmax.xlane.f32.xlu0 %v275
    %v397 = vpop.xlane.xlu0 %396
    %398 = vmax.xlane.f32.xlu0 %v276
    %v399 = vpop.xlane.xlu0 %398
    %400 = vmax.xlane.f32.xlu0 %v277
    %v401 = vpop.xlane.xlu0 %400
    %402 = vmax.xlane.f32.xlu0 %v278
    %v403 = vpop.xlane.xlu0 %402
    %404 = vmax.xlane.f32.xlu0 %v279
    %v405 = vpop.xlane.xlu0 %404
    %406 = vmax.xlane.f32.xlu0 %v280
    %v407 = vpop.xlane.xlu0 %406
    %408 = vmax.xlane.f32.xlu0 %v281
    %v409 = vpop.xlane.xlu0 %408
    %vm410 = vcmp.lt.f32.partialorder %v90, %v283
    %vm411 = vcmp.lt.f32.partialorder %v91, %v285
    %vm412 = vcmp.lt.f32.partialorder %v92, %v287
    %vm413 = vcmp.lt.f32.partialorder %v93, %v289
    %vm414 = vcmp.lt.f32.partialorder %v94, %v291
    %vm415 = vcmp.lt.f32.partialorder %v95, %v293
    %vm416 = vcmp.lt.f32.partialorder %v96, %v295
    %vm417 = vcmp.lt.f32.partialorder %v97, %v297
    %vm418 = vcmp.lt.f32.partialorder %v98, %v299
    %vm419 = vcmp.lt.f32.partialorder %v99, %v301
    %vm420 = vcmp.lt.f32.partialorder %v100, %v303
    %vm421 = vcmp.lt.f32.partialorder %v101, %v305
    %vm422 = vcmp.lt.f32.partialorder %v102, %v307
    %vm423 = vcmp.lt.f32.partialorder %v103, %v309
    %vm424 = vcmp.lt.f32.partialorder %v104, %v311
    %vm425 = vcmp.lt.f32.partialorder %v105, %v313
    %vm426 = vcmp.lt.f32.partialorder %v106, %v315
    %vm427 = vcmp.lt.f32.partialorder %v107, %v317
    %vm428 = vcmp.lt.f32.partialorder %v108, %v319
    %vm429 = vcmp.lt.f32.partialorder %v109, %v321
    %vm430 = vcmp.lt.f32.partialorder %v110, %v323
    %vm431 = vcmp.lt.f32.partialorder %v111, %v325
    %vm432 = vcmp.lt.f32.partialorder %v112, %v327
    %vm433 = vcmp.lt.f32.partialorder %v113, %v329
    %vm434 = vcmp.lt.f32.partialorder %v114, %v331
    %vm435 = vcmp.lt.f32.partialorder %v115, %v333
    %vm436 = vcmp.lt.f32.partialorder %v116, %v335
    %vm437 = vcmp.lt.f32.partialorder %v117, %v337
    %vm438 = vcmp.lt.f32.partialorder %v118, %v339
    %vm439 = vcmp.lt.f32.partialorder %v119, %v341
    %vm440 = vcmp.lt.f32.partialorder %v120, %v343
    %vm441 = vcmp.lt.f32.partialorder %v121, %v345
    %vm442 = vcmp.lt.f32.partialorder %v122, %v347
    %vm443 = vcmp.lt.f32.partialorder %v123, %v349
    %vm444 = vcmp.lt.f32.partialorder %v124, %v351
    %vm445 = vcmp.lt.f32.partialorder %v125, %v353
    %vm446 = vcmp.lt.f32.partialorder %v126, %v355
    %vm447 = vcmp.lt.f32.partialorder %v127, %v357
    %vm448 = vcmp.lt.f32.partialorder %v128, %v359
    %vm449 = vcmp.lt.f32.partialorder %v129, %v361
    %vm450 = vcmp.lt.f32.partialorder %v130, %v363
    %vm451 = vcmp.lt.f32.partialorder %v131, %v365
    %vm452 = vcmp.lt.f32.partialorder %v132, %v367
    %vm453 = vcmp.lt.f32.partialorder %v133, %v369
    %vm454 = vcmp.lt.f32.partialorder %v134, %v371
    %vm455 = vcmp.lt.f32.partialorder %v135, %v373
    %vm456 = vcmp.lt.f32.partialorder %v136, %v375
    %vm457 = vcmp.lt.f32.partialorder %v137, %v377
    %vm458 = vcmp.lt.f32.partialorder %v138, %v379
    %vm459 = vcmp.lt.f32.partialorder %v139, %v381
    %vm460 = vcmp.lt.f32.partialorder %v140, %v383
    %vm461 = vcmp.lt.f32.partialorder %v141, %v385
    %vm462 = vcmp.lt.f32.partialorder %v142, %v387
    %vm463 = vcmp.lt.f32.partialorder %v143, %v389
    %vm464 = vcmp.lt.f32.partialorder %v144, %v391
    %vm465 = vcmp.lt.f32.partialorder %v145, %v393
    %vm466 = vcmp.lt.f32.partialorder %v146, %v395
    %vm467 = vcmp.lt.f32.partialorder %v147, %v397
    %vm468 = vcmp.lt.f32.partialorder %v148, %v399
    %vm469 = vcmp.lt.f32.partialorder %v149, %v401
    %vm470 = vcmp.lt.f32.partialorder %v150, %v403
    %vm471 = vcmp.lt.f32.partialorder %v151, %v405
    %vm472 = vcmp.lt.f32.partialorder %v152, %v407
    %vm473 = vcmp.lt.f32.partialorder %v153, %v409
    %v474 = vsel %vm410, %v90, -inf
    %v475 = vsel %vm411, %v91, -inf
    %v476 = vsel %vm412, %v92, -inf
    %v477 = vsel %vm413, %v93, -inf
    %v478 = vsel %vm414, %v94, -inf
    %v479 = vsel %vm415, %v95, -inf
    %v480 = vsel %vm416, %v96, -inf
    %v481 = vsel %vm417, %v97, -inf
    %v482 = vsel %vm418, %v98, -inf
    %v483 = vsel %vm419, %v99, -inf
    %v484 = vsel %vm420, %v100, -inf
    %v485 = vsel %vm421, %v101, -inf
    %v486 = vsel %vm422, %v102, -inf
    %v487 = vsel %vm423, %v103, -inf
    %v488 = vsel %vm424, %v104, -inf
    %v489 = vsel %vm425, %v105, -inf
    %v490 = vsel %vm426, %v106, -inf
    %v491 = vsel %vm427, %v107, -inf
    %v492 = vsel %vm428, %v108, -inf
    %v493 = vsel %vm429, %v109, -inf
    %v494 = vsel %vm430, %v110, -inf
    %v495 = vsel %vm431, %v111, -inf
    %v496 = vsel %vm432, %v112, -inf
    %v497 = vsel %vm433, %v113, -inf
    %v498 = vsel %vm434, %v114, -inf
    %v499 = vsel %vm435, %v115, -inf
    %v500 = vsel %vm436, %v116, -inf
    %v501 = vsel %vm437, %v117, -inf
    %v502 = vsel %vm438, %v118, -inf
    %v503 = vsel %vm439, %v119, -inf
    %v504 = vsel %vm440, %v120, -inf
    %v505 = vsel %vm441, %v121, -inf
    %v506 = vsel %vm442, %v122, -inf
    %v507 = vsel %vm443, %v123, -inf
    %v508 = vsel %vm444, %v124, -inf
    %v509 = vsel %vm445, %v125, -inf
    %v510 = vsel %vm446, %v126, -inf
    %v511 = vsel %vm447, %v127, -inf
    %v512 = vsel %vm448, %v128, -inf
    %v513 = vsel %vm449, %v129, -inf
    %v514 = vsel %vm450, %v130, -inf
    %v515 = vsel %vm451, %v131, -inf
    %v516 = vsel %vm452, %v132, -inf
    %v517 = vsel %vm453, %v133, -inf
    %v518 = vsel %vm454, %v134, -inf
    %v519 = vsel %vm455, %v135, -inf
    %v520 = vsel %vm456, %v136, -inf
    %v521 = vsel %vm457, %v137, -inf
    %v522 = vsel %vm458, %v138, -inf
    %v523 = vsel %vm459, %v139, -inf
    %v524 = vsel %vm460, %v140, -inf
    %v525 = vsel %vm461, %v141, -inf
    %v526 = vsel %vm462, %v142, -inf
    %v527 = vsel %vm463, %v143, -inf
    %v528 = vsel %vm464, %v144, -inf
    %v529 = vsel %vm465, %v145, -inf
    %v530 = vsel %vm466, %v146, -inf
    %v531 = vsel %vm467, %v147, -inf
    %v532 = vsel %vm468, %v148, -inf
    %v533 = vsel %vm469, %v149, -inf
    %v534 = vsel %vm470, %v150, -inf
    %v535 = vsel %vm471, %v151, -inf
    %v536 = vsel %vm472, %v152, -inf
    %v537 = vsel %vm473, %v153, -inf
    %538 = vmax.xlane.f32.xlu0 %v474
    %v539 = vpop.xlane.xlu0 %538
    %540 = vmax.xlane.f32.xlu0 %v475
    %v541 = vpop.xlane.xlu0 %540
    %542 = vmax.xlane.f32.xlu0 %v476
    %v543 = vpop.xlane.xlu0 %542
    %544 = vmax.xlane.f32.xlu0 %v477
    %v545 = vpop.xlane.xlu0 %544
    %546 = vmax.xlane.f32.xlu0 %v478
    %v547 = vpop.xlane.xlu0 %546
    %548 = vmax.xlane.f32.xlu0 %v479
    %v549 = vpop.xlane.xlu0 %548
    %550 = vmax.xlane.f32.xlu0 %v480
    %v551 = vpop.xlane.xlu0 %550
    %552 = vmax.xlane.f32.xlu0 %v481
    %v553 = vpop.xlane.xlu0 %552
    %554 = vmax.xlane.f32.xlu0 %v482
    %v555 = vpop.xlane.xlu0 %554
    %556 = vmax.xlane.f32.xlu0 %v483
    %v557 = vpop.xlane.xlu0 %556
    %558 = vmax.xlane.f32.xlu0 %v484
    %v559 = vpop.xlane.xlu0 %558
    %560 = vmax.xlane.f32.xlu0 %v485
    %v561 = vpop.xlane.xlu0 %560
    %562 = vmax.xlane.f32.xlu0 %v486
    %v563 = vpop.xlane.xlu0 %562
    %564 = vmax.xlane.f32.xlu0 %v487
    %v565 = vpop.xlane.xlu0 %564
    %566 = vmax.xlane.f32.xlu0 %v488
    %v567 = vpop.xlane.xlu0 %566
    %568 = vmax.xlane.f32.xlu0 %v489
    %v569 = vpop.xlane.xlu0 %568
    %570 = vmax.xlane.f32.xlu0 %v490
    %v571 = vpop.xlane.xlu0 %570
    %572 = vmax.xlane.f32.xlu0 %v491
    %v573 = vpop.xlane.xlu0 %572
    %574 = vmax.xlane.f32.xlu0 %v492
    %v575 = vpop.xlane.xlu0 %574
    %576 = vmax.xlane.f32.xlu0 %v493
    %v577 = vpop.xlane.xlu0 %576
    %578 = vmax.xlane.f32.xlu0 %v494
    %v579 = vpop.xlane.xlu0 %578
    %580 = vmax.xlane.f32.xlu0 %v495
    %v581 = vpop.xlane.xlu0 %580
    %582 = vmax.xlane.f32.xlu0 %v496
    %v583 = vpop.xlane.xlu0 %582
    %584 = vmax.xlane.f32.xlu0 %v497
    %v585 = vpop.xlane.xlu0 %584
    %586 = vmax.xlane.f32.xlu0 %v498
    %v587 = vpop.xlane.xlu0 %586
    %588 = vmax.xlane.f32.xlu0 %v499
    %v589 = vpop.xlane.xlu0 %588
    %590 = vmax.xlane.f32.xlu0 %v500
    %v591 = vpop.xlane.xlu0 %590
    %592 = vmax.xlane.f32.xlu0 %v501
    %v593 = vpop.xlane.xlu0 %592
    %594 = vmax.xlane.f32.xlu0 %v502
    %v595 = vpop.xlane.xlu0 %594
    %596 = vmax.xlane.f32.xlu0 %v503
    %v597 = vpop.xlane.xlu0 %596
    %598 = vmax.xlane.f32.xlu0 %v504
    %v599 = vpop.xlane.xlu0 %598
    %600 = vmax.xlane.f32.xlu0 %v505
    %v601 = vpop.xlane.xlu0 %600
    %602 = vmax.xlane.f32.xlu0 %v506
    %v603 = vpop.xlane.xlu0 %602
    %604 = vmax.xlane.f32.xlu0 %v507
    %v605 = vpop.xlane.xlu0 %604
    %606 = vmax.xlane.f32.xlu0 %v508
    %v607 = vpop.xlane.xlu0 %606
    %608 = vmax.xlane.f32.xlu0 %v509
    %v609 = vpop.xlane.xlu0 %608
    %610 = vmax.xlane.f32.xlu0 %v510
    %v611 = vpop.xlane.xlu0 %610
    %612 = vmax.xlane.f32.xlu0 %v511
    %v613 = vpop.xlane.xlu0 %612
    %614 = vmax.xlane.f32.xlu0 %v512
    %v615 = vpop.xlane.xlu0 %614
    %616 = vmax.xlane.f32.xlu0 %v513
    %v617 = vpop.xlane.xlu0 %616
    %618 = vmax.xlane.f32.xlu0 %v514
    %v619 = vpop.xlane.xlu0 %618
    %620 = vmax.xlane.f32.xlu0 %v515
    %v621 = vpop.xlane.xlu0 %620
    %622 = vmax.xlane.f32.xlu0 %v516
    %v623 = vpop.xlane.xlu0 %622
    %624 = vmax.xlane.f32.xlu0 %v517
    %v625 = vpop.xlane.xlu0 %624
    %626 = vmax.xlane.f32.xlu0 %v518
    %v627 = vpop.xlane.xlu0 %626
    %628 = vmax.xlane.f32.xlu0 %v519
    %v629 = vpop.xlane.xlu0 %628
    %630 = vmax.xlane.f32.xlu0 %v520
    %v631 = vpop.xlane.xlu0 %630
    %632 = vmax.xlane.f32.xlu0 %v521
    %v633 = vpop.xlane.xlu0 %632
    %634 = vmax.xlane.f32.xlu0 %v522
    %v635 = vpop.xlane.xlu0 %634
    %636 = vmax.xlane.f32.xlu0 %v523
    %v637 = vpop.xlane.xlu0 %636
    %638 = vmax.xlane.f32.xlu0 %v524
    %v639 = vpop.xlane.xlu0 %638
    %640 = vmax.xlane.f32.xlu0 %v525
    %v641 = vpop.xlane.xlu0 %640
    %642 = vmax.xlane.f32.xlu0 %v526
    %v643 = vpop.xlane.xlu0 %642
    %644 = vmax.xlane.f32.xlu0 %v527
    %v645 = vpop.xlane.xlu0 %644
    %646 = vmax.xlane.f32.xlu0 %v528
    %v647 = vpop.xlane.xlu0 %646
    %648 = vmax.xlane.f32.xlu0 %v529
    %v649 = vpop.xlane.xlu0 %648
    %650 = vmax.xlane.f32.xlu0 %v530
    %v651 = vpop.xlane.xlu0 %650
    %652 = vmax.xlane.f32.xlu0 %v531
    %v653 = vpop.xlane.xlu0 %652
    %654 = vmax.xlane.f32.xlu0 %v532
    %v655 = vpop.xlane.xlu0 %654
    %656 = vmax.xlane.f32.xlu0 %v533
    %v657 = vpop.xlane.xlu0 %656
    %658 = vmax.xlane.f32.xlu0 %v534
    %v659 = vpop.xlane.xlu0 %658
    %660 = vmax.xlane.f32.xlu0 %v535
    %v661 = vpop.xlane.xlu0 %660
    %662 = vmax.xlane.f32.xlu0 %v536
    %v663 = vpop.xlane.xlu0 %662
    %664 = vmax.xlane.f32.xlu0 %v537
    %v665 = vpop.xlane.xlu0 %664
    %vm666 = vcmp.lt.f32.partialorder %v90, %v539
    %vm667 = vcmp.lt.f32.partialorder %v91, %v541
    %vm668 = vcmp.lt.f32.partialorder %v92, %v543
    %vm669 = vcmp.lt.f32.partialorder %v93, %v545
    %vm670 = vcmp.lt.f32.partialorder %v94, %v547
    %vm671 = vcmp.lt.f32.partialorder %v95, %v549
    %vm672 = vcmp.lt.f32.partialorder %v96, %v551
    %vm673 = vcmp.lt.f32.partialorder %v97, %v553
    %vm674 = vcmp.lt.f32.partialorder %v98, %v555
    %vm675 = vcmp.lt.f32.partialorder %v99, %v557
    %vm676 = vcmp.lt.f32.partialorder %v100, %v559
    %vm677 = vcmp.lt.f32.partialorder %v101, %v561
    %vm678 = vcmp.lt.f32.partialorder %v102, %v563
    %vm679 = vcmp.lt.f32.partialorder %v103, %v565
    %vm680 = vcmp.lt.f32.partialorder %v104, %v567
    %vm681 = vcmp.lt.f32.partialorder %v105, %v569
    %vm682 = vcmp.lt.f32.partialorder %v106, %v571
    %vm683 = vcmp.lt.f32.partialorder %v107, %v573
    %vm684 = vcmp.lt.f32.partialorder %v108, %v575
    %vm685 = vcmp.lt.f32.partialorder %v109, %v577
    %vm686 = vcmp.lt.f32.partialorder %v110, %v579
    %vm687 = vcmp.lt.f32.partialorder %v111, %v581
    %vm688 = vcmp.lt.f32.partialorder %v112, %v583
    %vm689 = vcmp.lt.f32.partialorder %v113, %v585
    %vm690 = vcmp.lt.f32.partialorder %v114, %v587
    %vm691 = vcmp.lt.f32.partialorder %v115, %v589
    %vm692 = vcmp.lt.f32.partialorder %v116, %v591
    %vm693 = vcmp.lt.f32.partialorder %v117, %v593
    %vm694 = vcmp.lt.f32.partialorder %v118, %v595
    %vm695 = vcmp.lt.f32.partialorder %v119, %v597
    %vm696 = vcmp.lt.f32.partialorder %v120, %v599
    %vm697 = vcmp.lt.f32.partialorder %v121, %v601
    %vm698 = vcmp.lt.f32.partialorder %v122, %v603
    %vm699 = vcmp.lt.f32.partialorder %v123, %v605
    %vm700 = vcmp.lt.f32.partialorder %v124, %v607
    %vm701 = vcmp.lt.f32.partialorder %v125, %v609
    %vm702 = vcmp.lt.f32.partialorder %v126, %v611
    %vm703 = vcmp.lt.f32.partialorder %v127, %v613
    %vm704 = vcmp.lt.f32.partialorder %v128, %v615
    %vm705 = vcmp.lt.f32.partialorder %v129, %v617
    %vm706 = vcmp.lt.f32.partialorder %v130, %v619
    %vm707 = vcmp.lt.f32.partialorder %v131, %v621
    %vm708 = vcmp.lt.f32.partialorder %v132, %v623
    %vm709 = vcmp.lt.f32.partialorder %v133, %v625
    %vm710 = vcmp.lt.f32.partialorder %v134, %v627
    %vm711 = vcmp.lt.f32.partialorder %v135, %v629
    %vm712 = vcmp.lt.f32.partialorder %v136, %v631
    %vm713 = vcmp.lt.f32.partialorder %v137, %v633
    %vm714 = vcmp.lt.f32.partialorder %v138, %v635
    %vm715 = vcmp.lt.f32.partialorder %v139, %v637
    %vm716 = vcmp.lt.f32.partialorder %v140, %v639
    %vm717 = vcmp.lt.f32.partialorder %v141, %v641
    %vm718 = vcmp.lt.f32.partialorder %v142, %v643
    %vm719 = vcmp.lt.f32.partialorder %v143, %v645
    %vm720 = vcmp.lt.f32.partialorder %v144, %v647
    %vm721 = vcmp.lt.f32.partialorder %v145, %v649
    %vm722 = vcmp.lt.f32.partialorder %v146, %v651
    %vm723 = vcmp.lt.f32.partialorder %v147, %v653
    %vm724 = vcmp.lt.f32.partialorder %v148, %v655
    %vm725 = vcmp.lt.f32.partialorder %v149, %v657
    %vm726 = vcmp.lt.f32.partialorder %v150, %v659
    %vm727 = vcmp.lt.f32.partialorder %v151, %v661
    %vm728 = vcmp.lt.f32.partialorder %v152, %v663
    %vm729 = vcmp.lt.f32.partialorder %v153, %v665
    %v730 = vsel %vm666, %v90, -inf
    %v731 = vsel %vm667, %v91, -inf
    %v732 = vsel %vm668, %v92, -inf
    %v733 = vsel %vm669, %v93, -inf
    %v734 = vsel %vm670, %v94, -inf
    %v735 = vsel %vm671, %v95, -inf
    %v736 = vsel %vm672, %v96, -inf
    %v737 = vsel %vm673, %v97, -inf
    %v738 = vsel %vm674, %v98, -inf
    %v739 = vsel %vm675, %v99, -inf
    %v740 = vsel %vm676, %v100, -inf
    %v741 = vsel %vm677, %v101, -inf
    %v742 = vsel %vm678, %v102, -inf
    %v743 = vsel %vm679, %v103, -inf
    %v744 = vsel %vm680, %v104, -inf
    %v745 = vsel %vm681, %v105, -inf
    %v746 = vsel %vm682, %v106, -inf
    %v747 = vsel %vm683, %v107, -inf
    %v748 = vsel %vm684, %v108, -inf
    %v749 = vsel %vm685, %v109, -inf
    %v750 = vsel %vm686, %v110, -inf
    %v751 = vsel %vm687, %v111, -inf
    %v752 = vsel %vm688, %v112, -inf
    %v753 = vsel %vm689, %v113, -inf
    %v754 = vsel %vm690, %v114, -inf
    %v755 = vsel %vm691, %v115, -inf
    %v756 = vsel %vm692, %v116, -inf
    %v757 = vsel %vm693, %v117, -inf
    %v758 = vsel %vm694, %v118, -inf
    %v759 = vsel %vm695, %v119, -inf
    %v760 = vsel %vm696, %v120, -inf
    %v761 = vsel %vm697, %v121, -inf
    %v762 = vsel %vm698, %v122, -inf
    %v763 = vsel %vm699, %v123, -inf
    %v764 = vsel %vm700, %v124, -inf
    %v765 = vsel %vm701, %v125, -inf
    %v766 = vsel %vm702, %v126, -inf
    %v767 = vsel %vm703, %v127, -inf
    %v768 = vsel %vm704, %v128, -inf
    %v769 = vsel %vm705, %v129, -inf
    %v770 = vsel %vm706, %v130, -inf
    %v771 = vsel %vm707, %v131, -inf
    %v772 = vsel %vm708, %v132, -inf
    %v773 = vsel %vm709, %v133, -inf
    %v774 = vsel %vm710, %v134, -inf
    %v775 = vsel %vm711, %v135, -inf
    %v776 = vsel %vm712, %v136, -inf
    %v777 = vsel %vm713, %v137, -inf
    %v778 = vsel %vm714, %v138, -inf
    %v779 = vsel %vm715, %v139, -inf
    %v780 = vsel %vm716, %v140, -inf
    %v781 = vsel %vm717, %v141, -inf
    %v782 = vsel %vm718, %v142, -inf
    %v783 = vsel %vm719, %v143, -inf
    %v784 = vsel %vm720, %v144, -inf
    %v785 = vsel %vm721, %v145, -inf
    %v786 = vsel %vm722, %v146, -inf
    %v787 = vsel %vm723, %v147, -inf
    %v788 = vsel %vm724, %v148, -inf
    %v789 = vsel %vm725, %v149, -inf
    %v790 = vsel %vm726, %v150, -inf
    %v791 = vsel %vm727, %v151, -inf
    %v792 = vsel %vm728, %v152, -inf
    %v793 = vsel %vm729, %v153, -inf
    %794 = vmax.xlane.f32.xlu0 %v730
    %v795 = vpop.xlane.xlu0 %794
    %796 = vmax.xlane.f32.xlu0 %v731
    %v797 = vpop.xlane.xlu0 %796
    %798 = vmax.xlane.f32.xlu0 %v732
    %v799 = vpop.xlane.xlu0 %798
    %800 = vmax.xlane.f32.xlu0 %v733
    %v801 = vpop.xlane.xlu0 %800
    %802 = vmax.xlane.f32.xlu0 %v734
    %v803 = vpop.xlane.xlu0 %802
    %804 = vmax.xlane.f32.xlu0 %v735
    %v805 = vpop.xlane.xlu0 %804
    %806 = vmax.xlane.f32.xlu0 %v736
    %v807 = vpop.xlane.xlu0 %806
    %808 = vmax.xlane.f32.xlu0 %v737
    %v809 = vpop.xlane.xlu0 %808
    %810 = vmax.xlane.f32.xlu0 %v738
    %v811 = vpop.xlane.xlu0 %810
    %812 = vmax.xlane.f32.xlu0 %v739
    %v813 = vpop.xlane.xlu0 %812
    %814 = vmax.xlane.f32.xlu0 %v740
    %v815 = vpop.xlane.xlu0 %814
    %816 = vmax.xlane.f32.xlu0 %v741
    %v817 = vpop.xlane.xlu0 %816
    %818 = vmax.xlane.f32.xlu0 %v742
    %v819 = vpop.xlane.xlu0 %818
    %820 = vmax.xlane.f32.xlu0 %v743
    %v821 = vpop.xlane.xlu0 %820
    %822 = vmax.xlane.f32.xlu0 %v744
    %v823 = vpop.xlane.xlu0 %822
    %824 = vmax.xlane.f32.xlu0 %v745
    %v825 = vpop.xlane.xlu0 %824
    %826 = vmax.xlane.f32.xlu0 %v746
    %v827 = vpop.xlane.xlu0 %826
    %828 = vmax.xlane.f32.xlu0 %v747
    %v829 = vpop.xlane.xlu0 %828
    %830 = vmax.xlane.f32.xlu0 %v748
    %v831 = vpop.xlane.xlu0 %830
    %832 = vmax.xlane.f32.xlu0 %v749
    %v833 = vpop.xlane.xlu0 %832
    %834 = vmax.xlane.f32.xlu0 %v750
    %v835 = vpop.xlane.xlu0 %834
    %836 = vmax.xlane.f32.xlu0 %v751
    %v837 = vpop.xlane.xlu0 %836
    %838 = vmax.xlane.f32.xlu0 %v752
    %v839 = vpop.xlane.xlu0 %838
    %840 = vmax.xlane.f32.xlu0 %v753
    %v841 = vpop.xlane.xlu0 %840
    %842 = vmax.xlane.f32.xlu0 %v754
    %v843 = vpop.xlane.xlu0 %842
    %844 = vmax.xlane.f32.xlu0 %v755
    %v845 = vpop.xlane.xlu0 %844
    %846 = vmax.xlane.f32.xlu0 %v756
    %v847 = vpop.xlane.xlu0 %846
    %848 = vmax.xlane.f32.xlu0 %v757
    %v849 = vpop.xlane.xlu0 %848
    %850 = vmax.xlane.f32.xlu0 %v758
    %v851 = vpop.xlane.xlu0 %850
    %852 = vmax.xlane.f32.xlu0 %v759
    %v853 = vpop.xlane.xlu0 %852
    %854 = vmax.xlane.f32.xlu0 %v760
    %v855 = vpop.xlane.xlu0 %854
    %856 = vmax.xlane.f32.xlu0 %v761
    %v857 = vpop.xlane.xlu0 %856
    %858 = vmax.xlane.f32.xlu0 %v762
    %v859 = vpop.xlane.xlu0 %858
    %860 = vmax.xlane.f32.xlu0 %v763
    %v861 = vpop.xlane.xlu0 %860
    %862 = vmax.xlane.f32.xlu0 %v764
    %v863 = vpop.xlane.xlu0 %862
    %864 = vmax.xlane.f32.xlu0 %v765
    %v865 = vpop.xlane.xlu0 %864
    %866 = vmax.xlane.f32.xlu0 %v766
    %v867 = vpop.xlane.xlu0 %866
    %868 = vmax.xlane.f32.xlu0 %v767
    %v869 = vpop.xlane.xlu0 %868
    %870 = vmax.xlane.f32.xlu0 %v768
    %v871 = vpop.xlane.xlu0 %870
    %872 = vmax.xlane.f32.xlu0 %v769
    %v873 = vpop.xlane.xlu0 %872
    %874 = vmax.xlane.f32.xlu0 %v770
    %v875 = vpop.xlane.xlu0 %874
    %876 = vmax.xlane.f32.xlu0 %v771
    %v877 = vpop.xlane.xlu0 %876
    %878 = vmax.xlane.f32.xlu0 %v772
    %v879 = vpop.xlane.xlu0 %878
    %880 = vmax.xlane.f32.xlu0 %v773
    %v881 = vpop.xlane.xlu0 %880
    %882 = vmax.xlane.f32.xlu0 %v774
    %v883 = vpop.xlane.xlu0 %882
    %884 = vmax.xlane.f32.xlu0 %v775
    %v885 = vpop.xlane.xlu0 %884
    %886 = vmax.xlane.f32.xlu0 %v776
    %v887 = vpop.xlane.xlu0 %886
    %888 = vmax.xlane.f32.xlu0 %v777
    %v889 = vpop.xlane.xlu0 %888
    %890 = vmax.xlane.f32.xlu0 %v778
    %v891 = vpop.xlane.xlu0 %890
    %892 = vmax.xlane.f32.xlu0 %v779
    %v893 = vpop.xlane.xlu0 %892
    %894 = vmax.xlane.f32.xlu0 %v780
    %v895 = vpop.xlane.xlu0 %894
    %896 = vmax.xlane.f32.xlu0 %v781
    %v897 = vpop.xlane.xlu0 %896
    %898 = vmax.xlane.f32.xlu0 %v782
    %v899 = vpop.xlane.xlu0 %898
    %900 = vmax.xlane.f32.xlu0 %v783
    %v901 = vpop.xlane.xlu0 %900
    %902 = vmax.xlane.f32.xlu0 %v784
    %v903 = vpop.xlane.xlu0 %902
    %904 = vmax.xlane.f32.xlu0 %v785
    %v905 = vpop.xlane.xlu0 %904
    %906 = vmax.xlane.f32.xlu0 %v786
    %v907 = vpop.xlane.xlu0 %906
    %908 = vmax.xlane.f32.xlu0 %v787
    %v909 = vpop.xlane.xlu0 %908
    %910 = vmax.xlane.f32.xlu0 %v788
    %v911 = vpop.xlane.xlu0 %910
    %912 = vmax.xlane.f32.xlu0 %v789
    %v913 = vpop.xlane.xlu0 %912
    %914 = vmax.xlane.f32.xlu0 %v790
    %v915 = vpop.xlane.xlu0 %914
    %916 = vmax.xlane.f32.xlu0 %v791
    %v917 = vpop.xlane.xlu0 %916
    %918 = vmax.xlane.f32.xlu0 %v792
    %v919 = vpop.xlane.xlu0 %918
    %920 = vmax.xlane.f32.xlu0 %v793
    %v921 = vpop.xlane.xlu0 %920
    %vm922 = vcmp.lt.f32.partialorder %v90, %v795
    %vm923 = vcmp.lt.f32.partialorder %v91, %v797
    %vm924 = vcmp.lt.f32.partialorder %v92, %v799
    %vm925 = vcmp.lt.f32.partialorder %v93, %v801
    %vm926 = vcmp.lt.f32.partialorder %v94, %v803
    %vm927 = vcmp.lt.f32.partialorder %v95, %v805
    %vm928 = vcmp.lt.f32.partialorder %v96, %v807
    %vm929 = vcmp.lt.f32.partialorder %v97, %v809
    %vm930 = vcmp.lt.f32.partialorder %v98, %v811
    %vm931 = vcmp.lt.f32.partialorder %v99, %v813
    %vm932 = vcmp.lt.f32.partialorder %v100, %v815
    %vm933 = vcmp.lt.f32.partialorder %v101, %v817
    %vm934 = vcmp.lt.f32.partialorder %v102, %v819
    %vm935 = vcmp.lt.f32.partialorder %v103, %v821
    %vm936 = vcmp.lt.f32.partialorder %v104, %v823
    %vm937 = vcmp.lt.f32.partialorder %v105, %v825
    %vm938 = vcmp.lt.f32.partialorder %v106, %v827
    %vm939 = vcmp.lt.f32.partialorder %v107, %v829
    %vm940 = vcmp.lt.f32.partialorder %v108, %v831
    %vm941 = vcmp.lt.f32.partialorder %v109, %v833
    %vm942 = vcmp.lt.f32.partialorder %v110, %v835
    %vm943 = vcmp.lt.f32.partialorder %v111, %v837
    %vm944 = vcmp.lt.f32.partialorder %v112, %v839
    %vm945 = vcmp.lt.f32.partialorder %v113, %v841
    %vm946 = vcmp.lt.f32.partialorder %v114, %v843
    %vm947 = vcmp.lt.f32.partialorder %v115, %v845
    %vm948 = vcmp.lt.f32.partialorder %v116, %v847
    %vm949 = vcmp.lt.f32.partialorder %v117, %v849
    %vm950 = vcmp.lt.f32.partialorder %v118, %v851
    %vm951 = vcmp.lt.f32.partialorder %v119, %v853
    %vm952 = vcmp.lt.f32.partialorder %v120, %v855
    %vm953 = vcmp.lt.f32.partialorder %v121, %v857
    %vm954 = vcmp.lt.f32.partialorder %v122, %v859
    %vm955 = vcmp.lt.f32.partialorder %v123, %v861
    %vm956 = vcmp.lt.f32.partialorder %v124, %v863
    %vm957 = vcmp.lt.f32.partialorder %v125, %v865
    %vm958 = vcmp.lt.f32.partialorder %v126, %v867
    %vm959 = vcmp.lt.f32.partialorder %v127, %v869
    %vm960 = vcmp.lt.f32.partialorder %v128, %v871
    %vm961 = vcmp.lt.f32.partialorder %v129, %v873
    %vm962 = vcmp.lt.f32.partialorder %v130, %v875
    %vm963 = vcmp.lt.f32.partialorder %v131, %v877
    %vm964 = vcmp.lt.f32.partialorder %v132, %v879
    %vm965 = vcmp.lt.f32.partialorder %v133, %v881
    %vm966 = vcmp.lt.f32.partialorder %v134, %v883
    %vm967 = vcmp.lt.f32.partialorder %v135, %v885
    %vm968 = vcmp.lt.f32.partialorder %v136, %v887
    %vm969 = vcmp.lt.f32.partialorder %v137, %v889
    %vm970 = vcmp.lt.f32.partialorder %v138, %v891
    %vm971 = vcmp.lt.f32.partialorder %v139, %v893
    %vm972 = vcmp.lt.f32.partialorder %v140, %v895
    %vm973 = vcmp.lt.f32.partialorder %v141, %v897
    %vm974 = vcmp.lt.f32.partialorder %v142, %v899
    %vm975 = vcmp.lt.f32.partialorder %v143, %v901
    %vm976 = vcmp.lt.f32.partialorder %v144, %v903
    %vm977 = vcmp.lt.f32.partialorder %v145, %v905
    %vm978 = vcmp.lt.f32.partialorder %v146, %v907
    %vm979 = vcmp.lt.f32.partialorder %v147, %v909
    %vm980 = vcmp.lt.f32.partialorder %v148, %v911
    %vm981 = vcmp.lt.f32.partialorder %v149, %v913
    %vm982 = vcmp.lt.f32.partialorder %v150, %v915
    %vm983 = vcmp.lt.f32.partialorder %v151, %v917
    %vm984 = vcmp.lt.f32.partialorder %v152, %v919
    %vm985 = vcmp.lt.f32.partialorder %v153, %v921
    %v986 = vsel %vm922, %v90, -inf
    %v987 = vsel %vm923, %v91, -inf
    %v988 = vsel %vm924, %v92, -inf
    %v989 = vsel %vm925, %v93, -inf
    %v990 = vsel %vm926, %v94, -inf
    %v991 = vsel %vm927, %v95, -inf
    %v992 = vsel %vm928, %v96, -inf
    %v993 = vsel %vm929, %v97, -inf
    %v994 = vsel %vm930, %v98, -inf
    %v995 = vsel %vm931, %v99, -inf
    %v996 = vsel %vm932, %v100, -inf
    %v997 = vsel %vm933, %v101, -inf
    %v998 = vsel %vm934, %v102, -inf
    %v999 = vsel %vm935, %v103, -inf
    %v1000 = vsel %vm936, %v104, -inf
    %v1001 = vsel %vm937, %v105, -inf
    %v1002 = vsel %vm938, %v106, -inf
    %v1003 = vsel %vm939, %v107, -inf
    %v1004 = vsel %vm940, %v108, -inf
    %v1005 = vsel %vm941, %v109, -inf
    %v1006 = vsel %vm942, %v110, -inf
    %v1007 = vsel %vm943, %v111, -inf
    %v1008 = vsel %vm944, %v112, -inf
    %v1009 = vsel %vm945, %v113, -inf
    %v1010 = vsel %vm946, %v114, -inf
    %v1011 = vsel %vm947, %v115, -inf
    %v1012 = vsel %vm948, %v116, -inf
    %v1013 = vsel %vm949, %v117, -inf
    %v1014 = vsel %vm950, %v118, -inf
    %v1015 = vsel %vm951, %v119, -inf
    %v1016 = vsel %vm952, %v120, -inf
    %v1017 = vsel %vm953, %v121, -inf
    %v1018 = vsel %vm954, %v122, -inf
    %v1019 = vsel %vm955, %v123, -inf
    %v1020 = vsel %vm956, %v124, -inf
    %v1021 = vsel %vm957, %v125, -inf
    %v1022 = vsel %vm958, %v126, -inf
    %v1023 = vsel %vm959, %v127, -inf
    %v1024 = vsel %vm960, %v128, -inf
    %v1025 = vsel %vm961, %v129, -inf
    %v1026 = vsel %vm962, %v130, -inf
    %v1027 = vsel %vm963, %v131, -inf
    %v1028 = vsel %vm964, %v132, -inf
    %v1029 = vsel %vm965, %v133, -inf
    %v1030 = vsel %vm966, %v134, -inf
    %v1031 = vsel %vm967, %v135, -inf
    %v1032 = vsel %vm968, %v136, -inf
    %v1033 = vsel %vm969, %v137, -inf
    %v1034 = vsel %vm970, %v138, -inf
    %v1035 = vsel %vm971, %v139, -inf
    %v1036 = vsel %vm972, %v140, -inf
    %v1037 = vsel %vm973, %v141, -inf
    %v1038 = vsel %vm974, %v142, -inf
    %v1039 = vsel %vm975, %v143, -inf
    %v1040 = vsel %vm976, %v144, -inf
    %v1041 = vsel %vm977, %v145, -inf
    %v1042 = vsel %vm978, %v146, -inf
    %v1043 = vsel %vm979, %v147, -inf
    %v1044 = vsel %vm980, %v148, -inf
    %v1045 = vsel %vm981, %v149, -inf
    %v1046 = vsel %vm982, %v150, -inf
    %v1047 = vsel %vm983, %v151, -inf
    %v1048 = vsel %vm984, %v152, -inf
    %v1049 = vsel %vm985, %v153, -inf
    %1050 = vmax.xlane.f32.xlu0 %v986
    %v1051 = vpop.xlane.xlu0 %1050
    %1052 = vmax.xlane.f32.xlu0 %v987
    %v1053 = vpop.xlane.xlu0 %1052
    %1054 = vmax.xlane.f32.xlu0 %v988
    %v1055 = vpop.xlane.xlu0 %1054
    %1056 = vmax.xlane.f32.xlu0 %v989
    %v1057 = vpop.xlane.xlu0 %1056
    %1058 = vmax.xlane.f32.xlu0 %v990
    %v1059 = vpop.xlane.xlu0 %1058
    %1060 = vmax.xlane.f32.xlu0 %v991
    %v1061 = vpop.xlane.xlu0 %1060
    %1062 = vmax.xlane.f32.xlu0 %v992
    %v1063 = vpop.xlane.xlu0 %1062
    %1064 = vmax.xlane.f32.xlu0 %v993
    %v1065 = vpop.xlane.xlu0 %1064
    %1066 = vmax.xlane.f32.xlu0 %v994
    %v1067 = vpop.xlane.xlu0 %1066
    %1068 = vmax.xlane.f32.xlu0 %v995
    %v1069 = vpop.xlane.xlu0 %1068
    %1070 = vmax.xlane.f32.xlu0 %v996
    %v1071 = vpop.xlane.xlu0 %1070
    %1072 = vmax.xlane.f32.xlu0 %v997
    %v1073 = vpop.xlane.xlu0 %1072
    %1074 = vmax.xlane.f32.xlu0 %v998
    %v1075 = vpop.xlane.xlu0 %1074
    %1076 = vmax.xlane.f32.xlu0 %v999
    %v1077 = vpop.xlane.xlu0 %1076
    %1078 = vmax.xlane.f32.xlu0 %v1000
    %v1079 = vpop.xlane.xlu0 %1078
    %1080 = vmax.xlane.f32.xlu0 %v1001
    %v1081 = vpop.xlane.xlu0 %1080
    %1082 = vmax.xlane.f32.xlu0 %v1002
    %v1083 = vpop.xlane.xlu0 %1082
    %1084 = vmax.xlane.f32.xlu0 %v1003
    %v1085 = vpop.xlane.xlu0 %1084
    %1086 = vmax.xlane.f32.xlu0 %v1004
    %v1087 = vpop.xlane.xlu0 %1086
    %1088 = vmax.xlane.f32.xlu0 %v1005
    %v1089 = vpop.xlane.xlu0 %1088
    %1090 = vmax.xlane.f32.xlu0 %v1006
    %v1091 = vpop.xlane.xlu0 %1090
    %1092 = vmax.xlane.f32.xlu0 %v1007
    %v1093 = vpop.xlane.xlu0 %1092
    %1094 = vmax.xlane.f32.xlu0 %v1008
    %v1095 = vpop.xlane.xlu0 %1094
    %1096 = vmax.xlane.f32.xlu0 %v1009
    %v1097 = vpop.xlane.xlu0 %1096
    %1098 = vmax.xlane.f32.xlu0 %v1010
    %v1099 = vpop.xlane.xlu0 %1098
    %1100 = vmax.xlane.f32.xlu0 %v1011
    %v1101 = vpop.xlane.xlu0 %1100
    %1102 = vmax.xlane.f32.xlu0 %v1012
    %v1103 = vpop.xlane.xlu0 %1102
    %1104 = vmax.xlane.f32.xlu0 %v1013
    %v1105 = vpop.xlane.xlu0 %1104
    %1106 = vmax.xlane.f32.xlu0 %v1014
    %v1107 = vpop.xlane.xlu0 %1106
    %1108 = vmax.xlane.f32.xlu0 %v1015
    %v1109 = vpop.xlane.xlu0 %1108
    %1110 = vmax.xlane.f32.xlu0 %v1016
    %v1111 = vpop.xlane.xlu0 %1110
    %1112 = vmax.xlane.f32.xlu0 %v1017
    %v1113 = vpop.xlane.xlu0 %1112
    %1114 = vmax.xlane.f32.xlu0 %v1018
    %v1115 = vpop.xlane.xlu0 %1114
    %1116 = vmax.xlane.f32.xlu0 %v1019
    %v1117 = vpop.xlane.xlu0 %1116
    %1118 = vmax.xlane.f32.xlu0 %v1020
    %v1119 = vpop.xlane.xlu0 %1118
    %1120 = vmax.xlane.f32.xlu0 %v1021
    %v1121 = vpop.xlane.xlu0 %1120
    %1122 = vmax.xlane.f32.xlu0 %v1022
    %v1123 = vpop.xlane.xlu0 %1122
    %1124 = vmax.xlane.f32.xlu0 %v1023
    %v1125 = vpop.xlane.xlu0 %1124
    %1126 = vmax.xlane.f32.xlu0 %v1024
    %v1127 = vpop.xlane.xlu0 %1126
    %1128 = vmax.xlane.f32.xlu0 %v1025
    %v1129 = vpop.xlane.xlu0 %1128
    %1130 = vmax.xlane.f32.xlu0 %v1026
    %v1131 = vpop.xlane.xlu0 %1130
    %1132 = vmax.xlane.f32.xlu0 %v1027
    %v1133 = vpop.xlane.xlu0 %1132
    %1134 = vmax.xlane.f32.xlu0 %v1028
    %v1135 = vpop.xlane.xlu0 %1134
    %1136 = vmax.xlane.f32.xlu0 %v1029
    %v1137 = vpop.xlane.xlu0 %1136
    %1138 = vmax.xlane.f32.xlu0 %v1030
    %v1139 = vpop.xlane.xlu0 %1138
    %1140 = vmax.xlane.f32.xlu0 %v1031
    %v1141 = vpop.xlane.xlu0 %1140
    %1142 = vmax.xlane.f32.xlu0 %v1032
    %v1143 = vpop.xlane.xlu0 %1142
    %1144 = vmax.xlane.f32.xlu0 %v1033
    %v1145 = vpop.xlane.xlu0 %1144
    %1146 = vmax.xlane.f32.xlu0 %v1034
    %v1147 = vpop.xlane.xlu0 %1146
    %1148 = vmax.xlane.f32.xlu0 %v1035
    %v1149 = vpop.xlane.xlu0 %1148
    %1150 = vmax.xlane.f32.xlu0 %v1036
    %v1151 = vpop.xlane.xlu0 %1150
    %1152 = vmax.xlane.f32.xlu0 %v1037
    %v1153 = vpop.xlane.xlu0 %1152
    %1154 = vmax.xlane.f32.xlu0 %v1038
    %v1155 = vpop.xlane.xlu0 %1154
    %1156 = vmax.xlane.f32.xlu0 %v1039
    %v1157 = vpop.xlane.xlu0 %1156
    %1158 = vmax.xlane.f32.xlu0 %v1040
    %v1159 = vpop.xlane.xlu0 %1158
    %1160 = vmax.xlane.f32.xlu0 %v1041
    %v1161 = vpop.xlane.xlu0 %1160
    %1162 = vmax.xlane.f32.xlu0 %v1042
    %v1163 = vpop.xlane.xlu0 %1162
    %1164 = vmax.xlane.f32.xlu0 %v1043
    %v1165 = vpop.xlane.xlu0 %1164
    %1166 = vmax.xlane.f32.xlu0 %v1044
    %v1167 = vpop.xlane.xlu0 %1166
    %1168 = vmax.xlane.f32.xlu0 %v1045
    %v1169 = vpop.xlane.xlu0 %1168
    %1170 = vmax.xlane.f32.xlu0 %v1046
    %v1171 = vpop.xlane.xlu0 %1170
    %1172 = vmax.xlane.f32.xlu0 %v1047
    %v1173 = vpop.xlane.xlu0 %1172
    %1174 = vmax.xlane.f32.xlu0 %v1048
    %v1175 = vpop.xlane.xlu0 %1174
    %1176 = vmax.xlane.f32.xlu0 %v1049
    %v1177 = vpop.xlane.xlu0 %1176
    %vm1178 = vcmp.lt.f32.partialorder %v90, %v1051
    %vm1179 = vcmp.lt.f32.partialorder %v91, %v1053
    %vm1180 = vcmp.lt.f32.partialorder %v92, %v1055
    %vm1181 = vcmp.lt.f32.partialorder %v93, %v1057
    %vm1182 = vcmp.lt.f32.partialorder %v94, %v1059
    %vm1183 = vcmp.lt.f32.partialorder %v95, %v1061
    %vm1184 = vcmp.lt.f32.partialorder %v96, %v1063
    %vm1185 = vcmp.lt.f32.partialorder %v97, %v1065
    %vm1186 = vcmp.lt.f32.partialorder %v98, %v1067
    %vm1187 = vcmp.lt.f32.partialorder %v99, %v1069
    %vm1188 = vcmp.lt.f32.partialorder %v100, %v1071
    %vm1189 = vcmp.lt.f32.partialorder %v101, %v1073
    %vm1190 = vcmp.lt.f32.partialorder %v102, %v1075
    %vm1191 = vcmp.lt.f32.partialorder %v103, %v1077
    %vm1192 = vcmp.lt.f32.partialorder %v104, %v1079
    %vm1193 = vcmp.lt.f32.partialorder %v105, %v1081
    %vm1194 = vcmp.lt.f32.partialorder %v106, %v1083
    %vm1195 = vcmp.lt.f32.partialorder %v107, %v1085
    %vm1196 = vcmp.lt.f32.partialorder %v108, %v1087
    %vm1197 = vcmp.lt.f32.partialorder %v109, %v1089
    %vm1198 = vcmp.lt.f32.partialorder %v110, %v1091
    %vm1199 = vcmp.lt.f32.partialorder %v111, %v1093
    %vm1200 = vcmp.lt.f32.partialorder %v112, %v1095
    %vm1201 = vcmp.lt.f32.partialorder %v113, %v1097
    %vm1202 = vcmp.lt.f32.partialorder %v114, %v1099
    %vm1203 = vcmp.lt.f32.partialorder %v115, %v1101
    %vm1204 = vcmp.lt.f32.partialorder %v116, %v1103
    %vm1205 = vcmp.lt.f32.partialorder %v117, %v1105
    %vm1206 = vcmp.lt.f32.partialorder %v118, %v1107
    %vm1207 = vcmp.lt.f32.partialorder %v119, %v1109
    %vm1208 = vcmp.lt.f32.partialorder %v120, %v1111
    %vm1209 = vcmp.lt.f32.partialorder %v121, %v1113
    %vm1210 = vcmp.lt.f32.partialorder %v122, %v1115
    %vm1211 = vcmp.lt.f32.partialorder %v123, %v1117
    %vm1212 = vcmp.lt.f32.partialorder %v124, %v1119
    %vm1213 = vcmp.lt.f32.partialorder %v125, %v1121
    %vm1214 = vcmp.lt.f32.partialorder %v126, %v1123
    %vm1215 = vcmp.lt.f32.partialorder %v127, %v1125
    %vm1216 = vcmp.lt.f32.partialorder %v128, %v1127
    %vm1217 = vcmp.lt.f32.partialorder %v129, %v1129
    %vm1218 = vcmp.lt.f32.partialorder %v130, %v1131
    %vm1219 = vcmp.lt.f32.partialorder %v131, %v1133
    %vm1220 = vcmp.lt.f32.partialorder %v132, %v1135
    %vm1221 = vcmp.lt.f32.partialorder %v133, %v1137
    %vm1222 = vcmp.lt.f32.partialorder %v134, %v1139
    %vm1223 = vcmp.lt.f32.partialorder %v135, %v1141
    %vm1224 = vcmp.lt.f32.partialorder %v136, %v1143
    %vm1225 = vcmp.lt.f32.partialorder %v137, %v1145
    %vm1226 = vcmp.lt.f32.partialorder %v138, %v1147
    %vm1227 = vcmp.lt.f32.partialorder %v139, %v1149
    %vm1228 = vcmp.lt.f32.partialorder %v140, %v1151
    %vm1229 = vcmp.lt.f32.partialorder %v141, %v1153
    %vm1230 = vcmp.lt.f32.partialorder %v142, %v1155
    %vm1231 = vcmp.lt.f32.partialorder %v143, %v1157
    %vm1232 = vcmp.lt.f32.partialorder %v144, %v1159
    %vm1233 = vcmp.lt.f32.partialorder %v145, %v1161
    %vm1234 = vcmp.lt.f32.partialorder %v146, %v1163
    %vm1235 = vcmp.lt.f32.partialorder %v147, %v1165
    %vm1236 = vcmp.lt.f32.partialorder %v148, %v1167
    %vm1237 = vcmp.lt.f32.partialorder %v149, %v1169
    %vm1238 = vcmp.lt.f32.partialorder %v150, %v1171
    %vm1239 = vcmp.lt.f32.partialorder %v151, %v1173
    %vm1240 = vcmp.lt.f32.partialorder %v152, %v1175
    %vm1241 = vcmp.lt.f32.partialorder %v153, %v1177
    %v1242 = vsel %vm1178, %v90, -inf
    %v1243 = vsel %vm1179, %v91, -inf
    %v1244 = vsel %vm1180, %v92, -inf
    %v1245 = vsel %vm1181, %v93, -inf
    %v1246 = vsel %vm1182, %v94, -inf
    %v1247 = vsel %vm1183, %v95, -inf
    %v1248 = vsel %vm1184, %v96, -inf
    %v1249 = vsel %vm1185, %v97, -inf
    %v1250 = vsel %vm1186, %v98, -inf
    %v1251 = vsel %vm1187, %v99, -inf
    %v1252 = vsel %vm1188, %v100, -inf
    %v1253 = vsel %vm1189, %v101, -inf
    %v1254 = vsel %vm1190, %v102, -inf
    %v1255 = vsel %vm1191, %v103, -inf
    %v1256 = vsel %vm1192, %v104, -inf
    %v1257 = vsel %vm1193, %v105, -inf
    %v1258 = vsel %vm1194, %v106, -inf
    %v1259 = vsel %vm1195, %v107, -inf
    %v1260 = vsel %vm1196, %v108, -inf
    %v1261 = vsel %vm1197, %v109, -inf
    %v1262 = vsel %vm1198, %v110, -inf
    %v1263 = vsel %vm1199, %v111, -inf
    %v1264 = vsel %vm1200, %v112, -inf
    %v1265 = vsel %vm1201, %v113, -inf
    %v1266 = vsel %vm1202, %v114, -inf
    %v1267 = vsel %vm1203, %v115, -inf
    %v1268 = vsel %vm1204, %v116, -inf
    %v1269 = vsel %vm1205, %v117, -inf
    %v1270 = vsel %vm1206, %v118, -inf
    %v1271 = vsel %vm1207, %v119, -inf
    %v1272 = vsel %vm1208, %v120, -inf
    %v1273 = vsel %vm1209, %v121, -inf
    %v1274 = vsel %vm1210, %v122, -inf
    %v1275 = vsel %vm1211, %v123, -inf
    %v1276 = vsel %vm1212, %v124, -inf
    %v1277 = vsel %vm1213, %v125, -inf
    %v1278 = vsel %vm1214, %v126, -inf
    %v1279 = vsel %vm1215, %v127, -inf
    %v1280 = vsel %vm1216, %v128, -inf
    %v1281 = vsel %vm1217, %v129, -inf
    %v1282 = vsel %vm1218, %v130, -inf
    %v1283 = vsel %vm1219, %v131, -inf
    %v1284 = vsel %vm1220, %v132, -inf
    %v1285 = vsel %vm1221, %v133, -inf
    %v1286 = vsel %vm1222, %v134, -inf
    %v1287 = vsel %vm1223, %v135, -inf
    %v1288 = vsel %vm1224, %v136, -inf
    %v1289 = vsel %vm1225, %v137, -inf
    %v1290 = vsel %vm1226, %v138, -inf
    %v1291 = vsel %vm1227, %v139, -inf
    %v1292 = vsel %vm1228, %v140, -inf
    %v1293 = vsel %vm1229, %v141, -inf
    %v1294 = vsel %vm1230, %v142, -inf
    %v1295 = vsel %vm1231, %v143, -inf
    %v1296 = vsel %vm1232, %v144, -inf
    %v1297 = vsel %vm1233, %v145, -inf
    %v1298 = vsel %vm1234, %v146, -inf
    %v1299 = vsel %vm1235, %v147, -inf
    %v1300 = vsel %vm1236, %v148, -inf
    %v1301 = vsel %vm1237, %v149, -inf
    %v1302 = vsel %vm1238, %v150, -inf
    %v1303 = vsel %vm1239, %v151, -inf
    %v1304 = vsel %vm1240, %v152, -inf
    %v1305 = vsel %vm1241, %v153, -inf
    %1306 = vmax.xlane.f32.xlu0 %v1242
    %v1307 = vpop.xlane.xlu0 %1306
    %1308 = vmax.xlane.f32.xlu0 %v1243
    %v1309 = vpop.xlane.xlu0 %1308
    %1310 = vmax.xlane.f32.xlu0 %v1244
    %v1311 = vpop.xlane.xlu0 %1310
    %1312 = vmax.xlane.f32.xlu0 %v1245
    %v1313 = vpop.xlane.xlu0 %1312
    %1314 = vmax.xlane.f32.xlu0 %v1246
    %v1315 = vpop.xlane.xlu0 %1314
    %1316 = vmax.xlane.f32.xlu0 %v1247
    %v1317 = vpop.xlane.xlu0 %1316
    %1318 = vmax.xlane.f32.xlu0 %v1248
    %v1319 = vpop.xlane.xlu0 %1318
    %1320 = vmax.xlane.f32.xlu0 %v1249
    %v1321 = vpop.xlane.xlu0 %1320
    %1322 = vmax.xlane.f32.xlu0 %v1250
    %v1323 = vpop.xlane.xlu0 %1322
    %1324 = vmax.xlane.f32.xlu0 %v1251
    %v1325 = vpop.xlane.xlu0 %1324
    %1326 = vmax.xlane.f32.xlu0 %v1252
    %v1327 = vpop.xlane.xlu0 %1326
    %1328 = vmax.xlane.f32.xlu0 %v1253
    %v1329 = vpop.xlane.xlu0 %1328
    %1330 = vmax.xlane.f32.xlu0 %v1254
    %v1331 = vpop.xlane.xlu0 %1330
    %1332 = vmax.xlane.f32.xlu0 %v1255
    %v1333 = vpop.xlane.xlu0 %1332
    %1334 = vmax.xlane.f32.xlu0 %v1256
    %v1335 = vpop.xlane.xlu0 %1334
    %1336 = vmax.xlane.f32.xlu0 %v1257
    %v1337 = vpop.xlane.xlu0 %1336
    %1338 = vmax.xlane.f32.xlu0 %v1258
    %v1339 = vpop.xlane.xlu0 %1338
    %1340 = vmax.xlane.f32.xlu0 %v1259
    %v1341 = vpop.xlane.xlu0 %1340
    %1342 = vmax.xlane.f32.xlu0 %v1260
    %v1343 = vpop.xlane.xlu0 %1342
    %1344 = vmax.xlane.f32.xlu0 %v1261
    %v1345 = vpop.xlane.xlu0 %1344
    %1346 = vmax.xlane.f32.xlu0 %v1262
    %v1347 = vpop.xlane.xlu0 %1346
    %1348 = vmax.xlane.f32.xlu0 %v1263
    %v1349 = vpop.xlane.xlu0 %1348
    %1350 = vmax.xlane.f32.xlu0 %v1264
    %v1351 = vpop.xlane.xlu0 %1350
    %1352 = vmax.xlane.f32.xlu0 %v1265
    %v1353 = vpop.xlane.xlu0 %1352
    %1354 = vmax.xlane.f32.xlu0 %v1266
    %v1355 = vpop.xlane.xlu0 %1354
    %1356 = vmax.xlane.f32.xlu0 %v1267
    %v1357 = vpop.xlane.xlu0 %1356
    %1358 = vmax.xlane.f32.xlu0 %v1268
    %v1359 = vpop.xlane.xlu0 %1358
    %1360 = vmax.xlane.f32.xlu0 %v1269
    %v1361 = vpop.xlane.xlu0 %1360
    %1362 = vmax.xlane.f32.xlu0 %v1270
    %v1363 = vpop.xlane.xlu0 %1362
    %1364 = vmax.xlane.f32.xlu0 %v1271
    %v1365 = vpop.xlane.xlu0 %1364
    %1366 = vmax.xlane.f32.xlu0 %v1272
    %v1367 = vpop.xlane.xlu0 %1366
    %1368 = vmax.xlane.f32.xlu0 %v1273
    %v1369 = vpop.xlane.xlu0 %1368
    %1370 = vmax.xlane.f32.xlu0 %v1274
    %v1371 = vpop.xlane.xlu0 %1370
    %1372 = vmax.xlane.f32.xlu0 %v1275
    %v1373 = vpop.xlane.xlu0 %1372
    %1374 = vmax.xlane.f32.xlu0 %v1276
    %v1375 = vpop.xlane.xlu0 %1374
    %1376 = vmax.xlane.f32.xlu0 %v1277
    %v1377 = vpop.xlane.xlu0 %1376
    %1378 = vmax.xlane.f32.xlu0 %v1278
    %v1379 = vpop.xlane.xlu0 %1378
    %1380 = vmax.xlane.f32.xlu0 %v1279
    %v1381 = vpop.xlane.xlu0 %1380
    %1382 = vmax.xlane.f32.xlu0 %v1280
    %v1383 = vpop.xlane.xlu0 %1382
    %1384 = vmax.xlane.f32.xlu0 %v1281
    %v1385 = vpop.xlane.xlu0 %1384
    %1386 = vmax.xlane.f32.xlu0 %v1282
    %v1387 = vpop.xlane.xlu0 %1386
    %1388 = vmax.xlane.f32.xlu0 %v1283
    %v1389 = vpop.xlane.xlu0 %1388
    %1390 = vmax.xlane.f32.xlu0 %v1284
    %v1391 = vpop.xlane.xlu0 %1390
    %1392 = vmax.xlane.f32.xlu0 %v1285
    %v1393 = vpop.xlane.xlu0 %1392
    %1394 = vmax.xlane.f32.xlu0 %v1286
    %v1395 = vpop.xlane.xlu0 %1394
    %1396 = vmax.xlane.f32.xlu0 %v1287
    %v1397 = vpop.xlane.xlu0 %1396
    %1398 = vmax.xlane.f32.xlu0 %v1288
    %v1399 = vpop.xlane.xlu0 %1398
    %1400 = vmax.xlane.f32.xlu0 %v1289
    %v1401 = vpop.xlane.xlu0 %1400
    %1402 = vmax.xlane.f32.xlu0 %v1290
    %v1403 = vpop.xlane.xlu0 %1402
    %1404 = vmax.xlane.f32.xlu0 %v1291
    %v1405 = vpop.xlane.xlu0 %1404
    %1406 = vmax.xlane.f32.xlu0 %v1292
    %v1407 = vpop.xlane.xlu0 %1406
    %1408 = vmax.xlane.f32.xlu0 %v1293
    %v1409 = vpop.xlane.xlu0 %1408
    %1410 = vmax.xlane.f32.xlu0 %v1294
    %v1411 = vpop.xlane.xlu0 %1410
    %1412 = vmax.xlane.f32.xlu0 %v1295
    %v1413 = vpop.xlane.xlu0 %1412
    %1414 = vmax.xlane.f32.xlu0 %v1296
    %v1415 = vpop.xlane.xlu0 %1414
    %1416 = vmax.xlane.f32.xlu0 %v1297
    %v1417 = vpop.xlane.xlu0 %1416
    %1418 = vmax.xlane.f32.xlu0 %v1298
    %v1419 = vpop.xlane.xlu0 %1418
    %1420 = vmax.xlane.f32.xlu0 %v1299
    %v1421 = vpop.xlane.xlu0 %1420
    %1422 = vmax.xlane.f32.xlu0 %v1300
    %v1423 = vpop.xlane.xlu0 %1422
    %1424 = vmax.xlane.f32.xlu0 %v1301
    %v1425 = vpop.xlane.xlu0 %1424
    %1426 = vmax.xlane.f32.xlu0 %v1302
    %v1427 = vpop.xlane.xlu0 %1426
    %1428 = vmax.xlane.f32.xlu0 %v1303
    %v1429 = vpop.xlane.xlu0 %1428
    %1430 = vmax.xlane.f32.xlu0 %v1304
    %v1431 = vpop.xlane.xlu0 %1430
    %1432 = vmax.xlane.f32.xlu0 %v1305
    %v1433 = vpop.xlane.xlu0 %1432
    %vm1434 = vcmp.lt.f32.partialorder %v90, %v1307
    %vm1435 = vcmp.lt.f32.partialorder %v91, %v1309
    %vm1436 = vcmp.lt.f32.partialorder %v92, %v1311
    %vm1437 = vcmp.lt.f32.partialorder %v93, %v1313
    %vm1438 = vcmp.lt.f32.partialorder %v94, %v1315
    %vm1439 = vcmp.lt.f32.partialorder %v95, %v1317
    %vm1440 = vcmp.lt.f32.partialorder %v96, %v1319
    %vm1441 = vcmp.lt.f32.partialorder %v97, %v1321
    %vm1442 = vcmp.lt.f32.partialorder %v98, %v1323
    %vm1443 = vcmp.lt.f32.partialorder %v99, %v1325
    %vm1444 = vcmp.lt.f32.partialorder %v100, %v1327
    %vm1445 = vcmp.lt.f32.partialorder %v101, %v1329
    %vm1446 = vcmp.lt.f32.partialorder %v102, %v1331
    %vm1447 = vcmp.lt.f32.partialorder %v103, %v1333
    %vm1448 = vcmp.lt.f32.partialorder %v104, %v1335
    %vm1449 = vcmp.lt.f32.partialorder %v105, %v1337
    %vm1450 = vcmp.lt.f32.partialorder %v106, %v1339
    %vm1451 = vcmp.lt.f32.partialorder %v107, %v1341
    %vm1452 = vcmp.lt.f32.partialorder %v108, %v1343
    %vm1453 = vcmp.lt.f32.partialorder %v109, %v1345
    %vm1454 = vcmp.lt.f32.partialorder %v110, %v1347
    %vm1455 = vcmp.lt.f32.partialorder %v111, %v1349
    %vm1456 = vcmp.lt.f32.partialorder %v112, %v1351
    %vm1457 = vcmp.lt.f32.partialorder %v113, %v1353
    %vm1458 = vcmp.lt.f32.partialorder %v114, %v1355
    %vm1459 = vcmp.lt.f32.partialorder %v115, %v1357
    %vm1460 = vcmp.lt.f32.partialorder %v116, %v1359
    %vm1461 = vcmp.lt.f32.partialorder %v117, %v1361
    %vm1462 = vcmp.lt.f32.partialorder %v118, %v1363
    %vm1463 = vcmp.lt.f32.partialorder %v119, %v1365
    %vm1464 = vcmp.lt.f32.partialorder %v120, %v1367
    %vm1465 = vcmp.lt.f32.partialorder %v121, %v1369
    %vm1466 = vcmp.lt.f32.partialorder %v122, %v1371
    %vm1467 = vcmp.lt.f32.partialorder %v123, %v1373
    %vm1468 = vcmp.lt.f32.partialorder %v124, %v1375
    %vm1469 = vcmp.lt.f32.partialorder %v125, %v1377
    %vm1470 = vcmp.lt.f32.partialorder %v126, %v1379
    %vm1471 = vcmp.lt.f32.partialorder %v127, %v1381
    %vm1472 = vcmp.lt.f32.partialorder %v128, %v1383
    %vm1473 = vcmp.lt.f32.partialorder %v129, %v1385
    %vm1474 = vcmp.lt.f32.partialorder %v130, %v1387
    %vm1475 = vcmp.lt.f32.partialorder %v131, %v1389
    %vm1476 = vcmp.lt.f32.partialorder %v132, %v1391
    %vm1477 = vcmp.lt.f32.partialorder %v133, %v1393
    %vm1478 = vcmp.lt.f32.partialorder %v134, %v1395
    %vm1479 = vcmp.lt.f32.partialorder %v135, %v1397
    %vm1480 = vcmp.lt.f32.partialorder %v136, %v1399
    %vm1481 = vcmp.lt.f32.partialorder %v137, %v1401
    %vm1482 = vcmp.lt.f32.partialorder %v138, %v1403
    %vm1483 = vcmp.lt.f32.partialorder %v139, %v1405
    %vm1484 = vcmp.lt.f32.partialorder %v140, %v1407
    %vm1485 = vcmp.lt.f32.partialorder %v141, %v1409
    %vm1486 = vcmp.lt.f32.partialorder %v142, %v1411
    %vm1487 = vcmp.lt.f32.partialorder %v143, %v1413
    %vm1488 = vcmp.lt.f32.partialorder %v144, %v1415
    %vm1489 = vcmp.lt.f32.partialorder %v145, %v1417
    %vm1490 = vcmp.lt.f32.partialorder %v146, %v1419
    %vm1491 = vcmp.lt.f32.partialorder %v147, %v1421
    %vm1492 = vcmp.lt.f32.partialorder %v148, %v1423
    %vm1493 = vcmp.lt.f32.partialorder %v149, %v1425
    %vm1494 = vcmp.lt.f32.partialorder %v150, %v1427
    %vm1495 = vcmp.lt.f32.partialorder %v151, %v1429
    %vm1496 = vcmp.lt.f32.partialorder %v152, %v1431
    %vm1497 = vcmp.lt.f32.partialorder %v153, %v1433
    %v1498 = vsel %vm1434, %v90, -inf
    %v1499 = vsel %vm1435, %v91, -inf
    %v1500 = vsel %vm1436, %v92, -inf
    %v1501 = vsel %vm1437, %v93, -inf
    %v1502 = vsel %vm1438, %v94, -inf
    %v1503 = vsel %vm1439, %v95, -inf
    %v1504 = vsel %vm1440, %v96, -inf
    %v1505 = vsel %vm1441, %v97, -inf
    %v1506 = vsel %vm1442, %v98, -inf
    %v1507 = vsel %vm1443, %v99, -inf
    %v1508 = vsel %vm1444, %v100, -inf
    %v1509 = vsel %vm1445, %v101, -inf
    %v1510 = vsel %vm1446, %v102, -inf
    %v1511 = vsel %vm1447, %v103, -inf
    %v1512 = vsel %vm1448, %v104, -inf
    %v1513 = vsel %vm1449, %v105, -inf
    %v1514 = vsel %vm1450, %v106, -inf
    %v1515 = vsel %vm1451, %v107, -inf
    %v1516 = vsel %vm1452, %v108, -inf
    %v1517 = vsel %vm1453, %v109, -inf
    %v1518 = vsel %vm1454, %v110, -inf
    %v1519 = vsel %vm1455, %v111, -inf
    %v1520 = vsel %vm1456, %v112, -inf
    %v1521 = vsel %vm1457, %v113, -inf
    %v1522 = vsel %vm1458, %v114, -inf
    %v1523 = vsel %vm1459, %v115, -inf
    %v1524 = vsel %vm1460, %v116, -inf
    %v1525 = vsel %vm1461, %v117, -inf
    %v1526 = vsel %vm1462, %v118, -inf
    %v1527 = vsel %vm1463, %v119, -inf
    %v1528 = vsel %vm1464, %v120, -inf
    %v1529 = vsel %vm1465, %v121, -inf
    %v1530 = vsel %vm1466, %v122, -inf
    %v1531 = vsel %vm1467, %v123, -inf
    %v1532 = vsel %vm1468, %v124, -inf
    %v1533 = vsel %vm1469, %v125, -inf
    %v1534 = vsel %vm1470, %v126, -inf
    %v1535 = vsel %vm1471, %v127, -inf
    %v1536 = vsel %vm1472, %v128, -inf
    %v1537 = vsel %vm1473, %v129, -inf
    %v1538 = vsel %vm1474, %v130, -inf
    %v1539 = vsel %vm1475, %v131, -inf
    %v1540 = vsel %vm1476, %v132, -inf
    %v1541 = vsel %vm1477, %v133, -inf
    %v1542 = vsel %vm1478, %v134, -inf
    %v1543 = vsel %vm1479, %v135, -inf
    %v1544 = vsel %vm1480, %v136, -inf
    %v1545 = vsel %vm1481, %v137, -inf
    %v1546 = vsel %vm1482, %v138, -inf
    %v1547 = vsel %vm1483, %v139, -inf
    %v1548 = vsel %vm1484, %v140, -inf
    %v1549 = vsel %vm1485, %v141, -inf
    %v1550 = vsel %vm1486, %v142, -inf
    %v1551 = vsel %vm1487, %v143, -inf
    %v1552 = vsel %vm1488, %v144, -inf
    %v1553 = vsel %vm1489, %v145, -inf
    %v1554 = vsel %vm1490, %v146, -inf
    %v1555 = vsel %vm1491, %v147, -inf
    %v1556 = vsel %vm1492, %v148, -inf
    %v1557 = vsel %vm1493, %v149, -inf
    %v1558 = vsel %vm1494, %v150, -inf
    %v1559 = vsel %vm1495, %v151, -inf
    %v1560 = vsel %vm1496, %v152, -inf
    %v1561 = vsel %vm1497, %v153, -inf
    %1562 = vmax.xlane.f32.xlu0 %v1498
    %v1563 = vpop.xlane.xlu0 %1562
    %1564 = vmax.xlane.f32.xlu0 %v1499
    %v1565 = vpop.xlane.xlu0 %1564
    %1566 = vmax.xlane.f32.xlu0 %v1500
    %v1567 = vpop.xlane.xlu0 %1566
    %1568 = vmax.xlane.f32.xlu0 %v1501
    %v1569 = vpop.xlane.xlu0 %1568
    %1570 = vmax.xlane.f32.xlu0 %v1502
    %v1571 = vpop.xlane.xlu0 %1570
    %1572 = vmax.xlane.f32.xlu0 %v1503
    %v1573 = vpop.xlane.xlu0 %1572
    %1574 = vmax.xlane.f32.xlu0 %v1504
    %v1575 = vpop.xlane.xlu0 %1574
    %1576 = vmax.xlane.f32.xlu0 %v1505
    %v1577 = vpop.xlane.xlu0 %1576
    %1578 = vmax.xlane.f32.xlu0 %v1506
    %v1579 = vpop.xlane.xlu0 %1578
    %1580 = vmax.xlane.f32.xlu0 %v1507
    %v1581 = vpop.xlane.xlu0 %1580
    %1582 = vmax.xlane.f32.xlu0 %v1508
    %v1583 = vpop.xlane.xlu0 %1582
    %1584 = vmax.xlane.f32.xlu0 %v1509
    %v1585 = vpop.xlane.xlu0 %1584
    %1586 = vmax.xlane.f32.xlu0 %v1510
    %v1587 = vpop.xlane.xlu0 %1586
    %1588 = vmax.xlane.f32.xlu0 %v1511
    %v1589 = vpop.xlane.xlu0 %1588
    %1590 = vmax.xlane.f32.xlu0 %v1512
    %v1591 = vpop.xlane.xlu0 %1590
    %1592 = vmax.xlane.f32.xlu0 %v1513
    %v1593 = vpop.xlane.xlu0 %1592
    %1594 = vmax.xlane.f32.xlu0 %v1514
    %v1595 = vpop.xlane.xlu0 %1594
    %1596 = vmax.xlane.f32.xlu0 %v1515
    %v1597 = vpop.xlane.xlu0 %1596
    %1598 = vmax.xlane.f32.xlu0 %v1516
    %v1599 = vpop.xlane.xlu0 %1598
    %1600 = vmax.xlane.f32.xlu0 %v1517
    %v1601 = vpop.xlane.xlu0 %1600
    %1602 = vmax.xlane.f32.xlu0 %v1518
    %v1603 = vpop.xlane.xlu0 %1602
    %1604 = vmax.xlane.f32.xlu0 %v1519
    %v1605 = vpop.xlane.xlu0 %1604
    %1606 = vmax.xlane.f32.xlu0 %v1520
    %v1607 = vpop.xlane.xlu0 %1606
    %1608 = vmax.xlane.f32.xlu0 %v1521
    %v1609 = vpop.xlane.xlu0 %1608
    %1610 = vmax.xlane.f32.xlu0 %v1522
    %v1611 = vpop.xlane.xlu0 %1610
    %1612 = vmax.xlane.f32.xlu0 %v1523
    %v1613 = vpop.xlane.xlu0 %1612
    %1614 = vmax.xlane.f32.xlu0 %v1524
    %v1615 = vpop.xlane.xlu0 %1614
    %1616 = vmax.xlane.f32.xlu0 %v1525
    %v1617 = vpop.xlane.xlu0 %1616
    %1618 = vmax.xlane.f32.xlu0 %v1526
    %v1619 = vpop.xlane.xlu0 %1618
    %1620 = vmax.xlane.f32.xlu0 %v1527
    %v1621 = vpop.xlane.xlu0 %1620
    %1622 = vmax.xlane.f32.xlu0 %v1528
    %v1623 = vpop.xlane.xlu0 %1622
    %1624 = vmax.xlane.f32.xlu0 %v1529
    %v1625 = vpop.xlane.xlu0 %1624
    %1626 = vmax.xlane.f32.xlu0 %v1530
    %v1627 = vpop.xlane.xlu0 %1626
    %1628 = vmax.xlane.f32.xlu0 %v1531
    %v1629 = vpop.xlane.xlu0 %1628
    %1630 = vmax.xlane.f32.xlu0 %v1532
    %v1631 = vpop.xlane.xlu0 %1630
    %1632 = vmax.xlane.f32.xlu0 %v1533
    %v1633 = vpop.xlane.xlu0 %1632
    %1634 = vmax.xlane.f32.xlu0 %v1534
    %v1635 = vpop.xlane.xlu0 %1634
    %1636 = vmax.xlane.f32.xlu0 %v1535
    %v1637 = vpop.xlane.xlu0 %1636
    %1638 = vmax.xlane.f32.xlu0 %v1536
    %v1639 = vpop.xlane.xlu0 %1638
    %1640 = vmax.xlane.f32.xlu0 %v1537
    %v1641 = vpop.xlane.xlu0 %1640
    %1642 = vmax.xlane.f32.xlu0 %v1538
    %v1643 = vpop.xlane.xlu0 %1642
    %1644 = vmax.xlane.f32.xlu0 %v1539
    %v1645 = vpop.xlane.xlu0 %1644
    %1646 = vmax.xlane.f32.xlu0 %v1540
    %v1647 = vpop.xlane.xlu0 %1646
    %1648 = vmax.xlane.f32.xlu0 %v1541
    %v1649 = vpop.xlane.xlu0 %1648
    %1650 = vmax.xlane.f32.xlu0 %v1542
    %v1651 = vpop.xlane.xlu0 %1650
    %1652 = vmax.xlane.f32.xlu0 %v1543
    %v1653 = vpop.xlane.xlu0 %1652
    %1654 = vmax.xlane.f32.xlu0 %v1544
    %v1655 = vpop.xlane.xlu0 %1654
    %1656 = vmax.xlane.f32.xlu0 %v1545
    %v1657 = vpop.xlane.xlu0 %1656
    %1658 = vmax.xlane.f32.xlu0 %v1546
    %v1659 = vpop.xlane.xlu0 %1658
    %1660 = vmax.xlane.f32.xlu0 %v1547
    %v1661 = vpop.xlane.xlu0 %1660
    %1662 = vmax.xlane.f32.xlu0 %v1548
    %v1663 = vpop.xlane.xlu0 %1662
    %1664 = vmax.xlane.f32.xlu0 %v1549
    %v1665 = vpop.xlane.xlu0 %1664
    %1666 = vmax.xlane.f32.xlu0 %v1550
    %v1667 = vpop.xlane.xlu0 %1666
    %1668 = vmax.xlane.f32.xlu0 %v1551
    %v1669 = vpop.xlane.xlu0 %1668
    %1670 = vmax.xlane.f32.xlu0 %v1552
    %v1671 = vpop.xlane.xlu0 %1670
    %1672 = vmax.xlane.f32.xlu0 %v1553
    %v1673 = vpop.xlane.xlu0 %1672
    %1674 = vmax.xlane.f32.xlu0 %v1554
    %v1675 = vpop.xlane.xlu0 %1674
    %1676 = vmax.xlane.f32.xlu0 %v1555
    %v1677 = vpop.xlane.xlu0 %1676
    %1678 = vmax.xlane.f32.xlu0 %v1556
    %v1679 = vpop.xlane.xlu0 %1678
    %1680 = vmax.xlane.f32.xlu0 %v1557
    %v1681 = vpop.xlane.xlu0 %1680
    %1682 = vmax.xlane.f32.xlu0 %v1558
    %v1683 = vpop.xlane.xlu0 %1682
    %1684 = vmax.xlane.f32.xlu0 %v1559
    %v1685 = vpop.xlane.xlu0 %1684
    %1686 = vmax.xlane.f32.xlu0 %v1560
    %v1687 = vpop.xlane.xlu0 %1686
    %1688 = vmax.xlane.f32.xlu0 %v1561
    %v1689 = vpop.xlane.xlu0 %1688
    %vm1690 = vcmp.lt.f32.partialorder %v90, %v1563
    %vm1691 = vcmp.lt.f32.partialorder %v91, %v1565
    %vm1692 = vcmp.lt.f32.partialorder %v92, %v1567
    %vm1693 = vcmp.lt.f32.partialorder %v93, %v1569
    %vm1694 = vcmp.lt.f32.partialorder %v94, %v1571
    %vm1695 = vcmp.lt.f32.partialorder %v95, %v1573
    %vm1696 = vcmp.lt.f32.partialorder %v96, %v1575
    %vm1697 = vcmp.lt.f32.partialorder %v97, %v1577
    %vm1698 = vcmp.lt.f32.partialorder %v98, %v1579
    %vm1699 = vcmp.lt.f32.partialorder %v99, %v1581
    %vm1700 = vcmp.lt.f32.partialorder %v100, %v1583
    %vm1701 = vcmp.lt.f32.partialorder %v101, %v1585
    %vm1702 = vcmp.lt.f32.partialorder %v102, %v1587
    %vm1703 = vcmp.lt.f32.partialorder %v103, %v1589
    %vm1704 = vcmp.lt.f32.partialorder %v104, %v1591
    %vm1705 = vcmp.lt.f32.partialorder %v105, %v1593
    %vm1706 = vcmp.lt.f32.partialorder %v106, %v1595
    %vm1707 = vcmp.lt.f32.partialorder %v107, %v1597
    %vm1708 = vcmp.lt.f32.partialorder %v108, %v1599
    %vm1709 = vcmp.lt.f32.partialorder %v109, %v1601
    %vm1710 = vcmp.lt.f32.partialorder %v110, %v1603
    %vm1711 = vcmp.lt.f32.partialorder %v111, %v1605
    %vm1712 = vcmp.lt.f32.partialorder %v112, %v1607
    %vm1713 = vcmp.lt.f32.partialorder %v113, %v1609
    %vm1714 = vcmp.lt.f32.partialorder %v114, %v1611
    %vm1715 = vcmp.lt.f32.partialorder %v115, %v1613
    %vm1716 = vcmp.lt.f32.partialorder %v116, %v1615
    %vm1717 = vcmp.lt.f32.partialorder %v117, %v1617
    %vm1718 = vcmp.lt.f32.partialorder %v118, %v1619
    %vm1719 = vcmp.lt.f32.partialorder %v119, %v1621
    %vm1720 = vcmp.lt.f32.partialorder %v120, %v1623
    %vm1721 = vcmp.lt.f32.partialorder %v121, %v1625
    %vm1722 = vcmp.lt.f32.partialorder %v122, %v1627
    %vm1723 = vcmp.lt.f32.partialorder %v123, %v1629
    %vm1724 = vcmp.lt.f32.partialorder %v124, %v1631
    %vm1725 = vcmp.lt.f32.partialorder %v125, %v1633
    %vm1726 = vcmp.lt.f32.partialorder %v126, %v1635
    %vm1727 = vcmp.lt.f32.partialorder %v127, %v1637
    %vm1728 = vcmp.lt.f32.partialorder %v128, %v1639
    %vm1729 = vcmp.lt.f32.partialorder %v129, %v1641
    %vm1730 = vcmp.lt.f32.partialorder %v130, %v1643
    %vm1731 = vcmp.lt.f32.partialorder %v131, %v1645
    %vm1732 = vcmp.lt.f32.partialorder %v132, %v1647
    %vm1733 = vcmp.lt.f32.partialorder %v133, %v1649
    %vm1734 = vcmp.lt.f32.partialorder %v134, %v1651
    %vm1735 = vcmp.lt.f32.partialorder %v135, %v1653
    %vm1736 = vcmp.lt.f32.partialorder %v136, %v1655
    %vm1737 = vcmp.lt.f32.partialorder %v137, %v1657
    %vm1738 = vcmp.lt.f32.partialorder %v138, %v1659
    %vm1739 = vcmp.lt.f32.partialorder %v139, %v1661
    %vm1740 = vcmp.lt.f32.partialorder %v140, %v1663
    %vm1741 = vcmp.lt.f32.partialorder %v141, %v1665
    %vm1742 = vcmp.lt.f32.partialorder %v142, %v1667
    %vm1743 = vcmp.lt.f32.partialorder %v143, %v1669
    %vm1744 = vcmp.lt.f32.partialorder %v144, %v1671
    %vm1745 = vcmp.lt.f32.partialorder %v145, %v1673
    %vm1746 = vcmp.lt.f32.partialorder %v146, %v1675
    %vm1747 = vcmp.lt.f32.partialorder %v147, %v1677
    %vm1748 = vcmp.lt.f32.partialorder %v148, %v1679
    %vm1749 = vcmp.lt.f32.partialorder %v149, %v1681
    %vm1750 = vcmp.lt.f32.partialorder %v150, %v1683
    %vm1751 = vcmp.lt.f32.partialorder %v151, %v1685
    %vm1752 = vcmp.lt.f32.partialorder %v152, %v1687
    %vm1753 = vcmp.lt.f32.partialorder %v153, %v1689
    %v1754 = vsel %vm1690, %v90, -inf
    %v1755 = vsel %vm1691, %v91, -inf
    %v1756 = vsel %vm1692, %v92, -inf
    %v1757 = vsel %vm1693, %v93, -inf
    %v1758 = vsel %vm1694, %v94, -inf
    %v1759 = vsel %vm1695, %v95, -inf
    %v1760 = vsel %vm1696, %v96, -inf
    %v1761 = vsel %vm1697, %v97, -inf
    %v1762 = vsel %vm1698, %v98, -inf
    %v1763 = vsel %vm1699, %v99, -inf
    %v1764 = vsel %vm1700, %v100, -inf
    %v1765 = vsel %vm1701, %v101, -inf
    %v1766 = vsel %vm1702, %v102, -inf
    %v1767 = vsel %vm1703, %v103, -inf
    %v1768 = vsel %vm1704, %v104, -inf
    %v1769 = vsel %vm1705, %v105, -inf
    %v1770 = vsel %vm1706, %v106, -inf
    %v1771 = vsel %vm1707, %v107, -inf
    %v1772 = vsel %vm1708, %v108, -inf
    %v1773 = vsel %vm1709, %v109, -inf
    %v1774 = vsel %vm1710, %v110, -inf
    %v1775 = vsel %vm1711, %v111, -inf
    %v1776 = vsel %vm1712, %v112, -inf
    %v1777 = vsel %vm1713, %v113, -inf
    %v1778 = vsel %vm1714, %v114, -inf
    %v1779 = vsel %vm1715, %v115, -inf
    %v1780 = vsel %vm1716, %v116, -inf
    %v1781 = vsel %vm1717, %v117, -inf
    %v1782 = vsel %vm1718, %v118, -inf
    %v1783 = vsel %vm1719, %v119, -inf
    %v1784 = vsel %vm1720, %v120, -inf
    %v1785 = vsel %vm1721, %v121, -inf
    %v1786 = vsel %vm1722, %v122, -inf
    %v1787 = vsel %vm1723, %v123, -inf
    %v1788 = vsel %vm1724, %v124, -inf
    %v1789 = vsel %vm1725, %v125, -inf
    %v1790 = vsel %vm1726, %v126, -inf
    %v1791 = vsel %vm1727, %v127, -inf
    %v1792 = vsel %vm1728, %v128, -inf
    %v1793 = vsel %vm1729, %v129, -inf
    %v1794 = vsel %vm1730, %v130, -inf
    %v1795 = vsel %vm1731, %v131, -inf
    %v1796 = vsel %vm1732, %v132, -inf
    %v1797 = vsel %vm1733, %v133, -inf
    %v1798 = vsel %vm1734, %v134, -inf
    %v1799 = vsel %vm1735, %v135, -inf
    %v1800 = vsel %vm1736, %v136, -inf
    %v1801 = vsel %vm1737, %v137, -inf
    %v1802 = vsel %vm1738, %v138, -inf
    %v1803 = vsel %vm1739, %v139, -inf
    %v1804 = vsel %vm1740, %v140, -inf
    %v1805 = vsel %vm1741, %v141, -inf
    %v1806 = vsel %vm1742, %v142, -inf
    %v1807 = vsel %vm1743, %v143, -inf
    %v1808 = vsel %vm1744, %v144, -inf
    %v1809 = vsel %vm1745, %v145, -inf
    %v1810 = vsel %vm1746, %v146, -inf
    %v1811 = vsel %vm1747, %v147, -inf
    %v1812 = vsel %vm1748, %v148, -inf
    %v1813 = vsel %vm1749, %v149, -inf
    %v1814 = vsel %vm1750, %v150, -inf
    %v1815 = vsel %vm1751, %v151, -inf
    %v1816 = vsel %vm1752, %v152, -inf
    %v1817 = vsel %vm1753, %v153, -inf
    %1818 = vmax.xlane.f32.xlu0 %v1754
    %v1819 = vpop.xlane.xlu0 %1818
    %1820 = vmax.xlane.f32.xlu0 %v1755
    %v1821 = vpop.xlane.xlu0 %1820
    %1822 = vmax.xlane.f32.xlu0 %v1756
    %v1823 = vpop.xlane.xlu0 %1822
    %1824 = vmax.xlane.f32.xlu0 %v1757
    %v1825 = vpop.xlane.xlu0 %1824
    %1826 = vmax.xlane.f32.xlu0 %v1758
    %v1827 = vpop.xlane.xlu0 %1826
    %1828 = vmax.xlane.f32.xlu0 %v1759
    %v1829 = vpop.xlane.xlu0 %1828
    %1830 = vmax.xlane.f32.xlu0 %v1760
    %v1831 = vpop.xlane.xlu0 %1830
    %1832 = vmax.xlane.f32.xlu0 %v1761
    %v1833 = vpop.xlane.xlu0 %1832
    %1834 = vmax.xlane.f32.xlu0 %v1762
    %v1835 = vpop.xlane.xlu0 %1834
    %1836 = vmax.xlane.f32.xlu0 %v1763
    %v1837 = vpop.xlane.xlu0 %1836
    %1838 = vmax.xlane.f32.xlu0 %v1764
    %v1839 = vpop.xlane.xlu0 %1838
    %1840 = vmax.xlane.f32.xlu0 %v1765
    %v1841 = vpop.xlane.xlu0 %1840
    %1842 = vmax.xlane.f32.xlu0 %v1766
    %v1843 = vpop.xlane.xlu0 %1842
    %1844 = vmax.xlane.f32.xlu0 %v1767
    %v1845 = vpop.xlane.xlu0 %1844
    %1846 = vmax.xlane.f32.xlu0 %v1768
    %v1847 = vpop.xlane.xlu0 %1846
    %1848 = vmax.xlane.f32.xlu0 %v1769
    %v1849 = vpop.xlane.xlu0 %1848
    %1850 = vmax.xlane.f32.xlu0 %v1770
    %v1851 = vpop.xlane.xlu0 %1850
    %1852 = vmax.xlane.f32.xlu0 %v1771
    %v1853 = vpop.xlane.xlu0 %1852
    %1854 = vmax.xlane.f32.xlu0 %v1772
    %v1855 = vpop.xlane.xlu0 %1854
    %1856 = vmax.xlane.f32.xlu0 %v1773
    %v1857 = vpop.xlane.xlu0 %1856
    %1858 = vmax.xlane.f32.xlu0 %v1774
    %v1859 = vpop.xlane.xlu0 %1858
    %1860 = vmax.xlane.f32.xlu0 %v1775
    %v1861 = vpop.xlane.xlu0 %1860
    %1862 = vmax.xlane.f32.xlu0 %v1776
    %v1863 = vpop.xlane.xlu0 %1862
    %1864 = vmax.xlane.f32.xlu0 %v1777
    %v1865 = vpop.xlane.xlu0 %1864
    %1866 = vmax.xlane.f32.xlu0 %v1778
    %v1867 = vpop.xlane.xlu0 %1866
    %1868 = vmax.xlane.f32.xlu0 %v1779
    %v1869 = vpop.xlane.xlu0 %1868
    %1870 = vmax.xlane.f32.xlu0 %v1780
    %v1871 = vpop.xlane.xlu0 %1870
    %1872 = vmax.xlane.f32.xlu0 %v1781
    %v1873 = vpop.xlane.xlu0 %1872
    %1874 = vmax.xlane.f32.xlu0 %v1782
    %v1875 = vpop.xlane.xlu0 %1874
    %1876 = vmax.xlane.f32.xlu0 %v1783
    %v1877 = vpop.xlane.xlu0 %1876
    %1878 = vmax.xlane.f32.xlu0 %v1784
    %v1879 = vpop.xlane.xlu0 %1878
    %1880 = vmax.xlane.f32.xlu0 %v1785
    %v1881 = vpop.xlane.xlu0 %1880
    %1882 = vmax.xlane.f32.xlu0 %v1786
    %v1883 = vpop.xlane.xlu0 %1882
    %1884 = vmax.xlane.f32.xlu0 %v1787
    %v1885 = vpop.xlane.xlu0 %1884
    %1886 = vmax.xlane.f32.xlu0 %v1788
    %v1887 = vpop.xlane.xlu0 %1886
    %1888 = vmax.xlane.f32.xlu0 %v1789
    %v1889 = vpop.xlane.xlu0 %1888
    %1890 = vmax.xlane.f32.xlu0 %v1790
    %v1891 = vpop.xlane.xlu0 %1890
    %1892 = vmax.xlane.f32.xlu0 %v1791
    %v1893 = vpop.xlane.xlu0 %1892
    %1894 = vmax.xlane.f32.xlu0 %v1792
    %v1895 = vpop.xlane.xlu0 %1894
    %1896 = vmax.xlane.f32.xlu0 %v1793
    %v1897 = vpop.xlane.xlu0 %1896
    %1898 = vmax.xlane.f32.xlu0 %v1794
    %v1899 = vpop.xlane.xlu0 %1898
    %1900 = vmax.xlane.f32.xlu0 %v1795
    %v1901 = vpop.xlane.xlu0 %1900
    %1902 = vmax.xlane.f32.xlu0 %v1796
    %v1903 = vpop.xlane.xlu0 %1902
    %1904 = vmax.xlane.f32.xlu0 %v1797
    %v1905 = vpop.xlane.xlu0 %1904
    %1906 = vmax.xlane.f32.xlu0 %v1798
    %v1907 = vpop.xlane.xlu0 %1906
    %1908 = vmax.xlane.f32.xlu0 %v1799
    %v1909 = vpop.xlane.xlu0 %1908
    %1910 = vmax.xlane.f32.xlu0 %v1800
    %v1911 = vpop.xlane.xlu0 %1910
    %1912 = vmax.xlane.f32.xlu0 %v1801
    %v1913 = vpop.xlane.xlu0 %1912
    %1914 = vmax.xlane.f32.xlu0 %v1802
    %v1915 = vpop.xlane.xlu0 %1914
    %1916 = vmax.xlane.f32.xlu0 %v1803
    %v1917 = vpop.xlane.xlu0 %1916
    %1918 = vmax.xlane.f32.xlu0 %v1804
    %v1919 = vpop.xlane.xlu0 %1918
    %1920 = vmax.xlane.f32.xlu0 %v1805
    %v1921 = vpop.xlane.xlu0 %1920
    %1922 = vmax.xlane.f32.xlu0 %v1806
    %v1923 = vpop.xlane.xlu0 %1922
    %1924 = vmax.xlane.f32.xlu0 %v1807
    %v1925 = vpop.xlane.xlu0 %1924
    %1926 = vmax.xlane.f32.xlu0 %v1808
    %v1927 = vpop.xlane.xlu0 %1926
    %1928 = vmax.xlane.f32.xlu0 %v1809
    %v1929 = vpop.xlane.xlu0 %1928
    %1930 = vmax.xlane.f32.xlu0 %v1810
    %v1931 = vpop.xlane.xlu0 %1930
    %1932 = vmax.xlane.f32.xlu0 %v1811
    %v1933 = vpop.xlane.xlu0 %1932
    %1934 = vmax.xlane.f32.xlu0 %v1812
    %v1935 = vpop.xlane.xlu0 %1934
    %1936 = vmax.xlane.f32.xlu0 %v1813
    %v1937 = vpop.xlane.xlu0 %1936
    %1938 = vmax.xlane.f32.xlu0 %v1814
    %v1939 = vpop.xlane.xlu0 %1938
    %1940 = vmax.xlane.f32.xlu0 %v1815
    %v1941 = vpop.xlane.xlu0 %1940
    %1942 = vmax.xlane.f32.xlu0 %v1816
    %v1943 = vpop.xlane.xlu0 %1942
    %1944 = vmax.xlane.f32.xlu0 %v1817
    %v1945 = vpop.xlane.xlu0 %1944
    %vm1946 = vcmp.lt.f32.partialorder %v90, %v1819
    %vm1947 = vcmp.lt.f32.partialorder %v91, %v1821
    %vm1948 = vcmp.lt.f32.partialorder %v92, %v1823
    %vm1949 = vcmp.lt.f32.partialorder %v93, %v1825
    %vm1950 = vcmp.lt.f32.partialorder %v94, %v1827
    %vm1951 = vcmp.lt.f32.partialorder %v95, %v1829
    %vm1952 = vcmp.lt.f32.partialorder %v96, %v1831
    %vm1953 = vcmp.lt.f32.partialorder %v97, %v1833
    %vm1954 = vcmp.lt.f32.partialorder %v98, %v1835
    %vm1955 = vcmp.lt.f32.partialorder %v99, %v1837
    %vm1956 = vcmp.lt.f32.partialorder %v100, %v1839
    %vm1957 = vcmp.lt.f32.partialorder %v101, %v1841
    %vm1958 = vcmp.lt.f32.partialorder %v102, %v1843
    %vm1959 = vcmp.lt.f32.partialorder %v103, %v1845
    %vm1960 = vcmp.lt.f32.partialorder %v104, %v1847
    %vm1961 = vcmp.lt.f32.partialorder %v105, %v1849
    %vm1962 = vcmp.lt.f32.partialorder %v106, %v1851
    %vm1963 = vcmp.lt.f32.partialorder %v107, %v1853
    %vm1964 = vcmp.lt.f32.partialorder %v108, %v1855
    %vm1965 = vcmp.lt.f32.partialorder %v109, %v1857
    %vm1966 = vcmp.lt.f32.partialorder %v110, %v1859
    %vm1967 = vcmp.lt.f32.partialorder %v111, %v1861
    %vm1968 = vcmp.lt.f32.partialorder %v112, %v1863
    %vm1969 = vcmp.lt.f32.partialorder %v113, %v1865
    %vm1970 = vcmp.lt.f32.partialorder %v114, %v1867
    %vm1971 = vcmp.lt.f32.partialorder %v115, %v1869
    %vm1972 = vcmp.lt.f32.partialorder %v116, %v1871
    %vm1973 = vcmp.lt.f32.partialorder %v117, %v1873
    %vm1974 = vcmp.lt.f32.partialorder %v118, %v1875
    %vm1975 = vcmp.lt.f32.partialorder %v119, %v1877
    %vm1976 = vcmp.lt.f32.partialorder %v120, %v1879
    %vm1977 = vcmp.lt.f32.partialorder %v121, %v1881
    %vm1978 = vcmp.lt.f32.partialorder %v122, %v1883
    %vm1979 = vcmp.lt.f32.partialorder %v123, %v1885
    %vm1980 = vcmp.lt.f32.partialorder %v124, %v1887
    %vm1981 = vcmp.lt.f32.partialorder %v125, %v1889
    %vm1982 = vcmp.lt.f32.partialorder %v126, %v1891
    %vm1983 = vcmp.lt.f32.partialorder %v127, %v1893
    %vm1984 = vcmp.lt.f32.partialorder %v128, %v1895
    %vm1985 = vcmp.lt.f32.partialorder %v129, %v1897
    %vm1986 = vcmp.lt.f32.partialorder %v130, %v1899
    %vm1987 = vcmp.lt.f32.partialorder %v131, %v1901
    %vm1988 = vcmp.lt.f32.partialorder %v132, %v1903
    %vm1989 = vcmp.lt.f32.partialorder %v133, %v1905
    %vm1990 = vcmp.lt.f32.partialorder %v134, %v1907
    %vm1991 = vcmp.lt.f32.partialorder %v135, %v1909
    %vm1992 = vcmp.lt.f32.partialorder %v136, %v1911
    %vm1993 = vcmp.lt.f32.partialorder %v137, %v1913
    %vm1994 = vcmp.lt.f32.partialorder %v138, %v1915
    %vm1995 = vcmp.lt.f32.partialorder %v139, %v1917
    %vm1996 = vcmp.lt.f32.partialorder %v140, %v1919
    %vm1997 = vcmp.lt.f32.partialorder %v141, %v1921
    %vm1998 = vcmp.lt.f32.partialorder %v142, %v1923
    %vm1999 = vcmp.lt.f32.partialorder %v143, %v1925
    %vm2000 = vcmp.lt.f32.partialorder %v144, %v1927
    %vm2001 = vcmp.lt.f32.partialorder %v145, %v1929
    %vm2002 = vcmp.lt.f32.partialorder %v146, %v1931
    %vm2003 = vcmp.lt.f32.partialorder %v147, %v1933
    %vm2004 = vcmp.lt.f32.partialorder %v148, %v1935
    %vm2005 = vcmp.lt.f32.partialorder %v149, %v1937
    %vm2006 = vcmp.lt.f32.partialorder %v150, %v1939
    %vm2007 = vcmp.lt.f32.partialorder %v151, %v1941
    %vm2008 = vcmp.lt.f32.partialorder %v152, %v1943
    %vm2009 = vcmp.lt.f32.partialorder %v153, %v1945
    %v2010 = vsel %vm1946, %v90, -inf
    %v2011 = vsel %vm1947, %v91, -inf
    %v2012 = vsel %vm1948, %v92, -inf
    %v2013 = vsel %vm1949, %v93, -inf
    %v2014 = vsel %vm1950, %v94, -inf
    %v2015 = vsel %vm1951, %v95, -inf
    %v2016 = vsel %vm1952, %v96, -inf
    %v2017 = vsel %vm1953, %v97, -inf
    %v2018 = vsel %vm1954, %v98, -inf
    %v2019 = vsel %vm1955, %v99, -inf
    %v2020 = vsel %vm1956, %v100, -inf
    %v2021 = vsel %vm1957, %v101, -inf
    %v2022 = vsel %vm1958, %v102, -inf
    %v2023 = vsel %vm1959, %v103, -inf
    %v2024 = vsel %vm1960, %v104, -inf
    %v2025 = vsel %vm1961, %v105, -inf
    %v2026 = vsel %vm1962, %v106, -inf
    %v2027 = vsel %vm1963, %v107, -inf
    %v2028 = vsel %vm1964, %v108, -inf
    %v2029 = vsel %vm1965, %v109, -inf
    %v2030 = vsel %vm1966, %v110, -inf
    %v2031 = vsel %vm1967, %v111, -inf
    %v2032 = vsel %vm1968, %v112, -inf
    %v2033 = vsel %vm1969, %v113, -inf
    %v2034 = vsel %vm1970, %v114, -inf
    %v2035 = vsel %vm1971, %v115, -inf
    %v2036 = vsel %vm1972, %v116, -inf
    %v2037 = vsel %vm1973, %v117, -inf
    %v2038 = vsel %vm1974, %v118, -inf
    %v2039 = vsel %vm1975, %v119, -inf
    %v2040 = vsel %vm1976, %v120, -inf
    %v2041 = vsel %vm1977, %v121, -inf
    %v2042 = vsel %vm1978, %v122, -inf
    %v2043 = vsel %vm1979, %v123, -inf
    %v2044 = vsel %vm1980, %v124, -inf
    %v2045 = vsel %vm1981, %v125, -inf
    %v2046 = vsel %vm1982, %v126, -inf
    %v2047 = vsel %vm1983, %v127, -inf
    %v2048 = vsel %vm1984, %v128, -inf
    %v2049 = vsel %vm1985, %v129, -inf
    %v2050 = vsel %vm1986, %v130, -inf
    %v2051 = vsel %vm1987, %v131, -inf
    %v2052 = vsel %vm1988, %v132, -inf
    %v2053 = vsel %vm1989, %v133, -inf
    %v2054 = vsel %vm1990, %v134, -inf
    %v2055 = vsel %vm1991, %v135, -inf
    %v2056 = vsel %vm1992, %v136, -inf
    %v2057 = vsel %vm1993, %v137, -inf
    %v2058 = vsel %vm1994, %v138, -inf
    %v2059 = vsel %vm1995, %v139, -inf
    %v2060 = vsel %vm1996, %v140, -inf
    %v2061 = vsel %vm1997, %v141, -inf
    %v2062 = vsel %vm1998, %v142, -inf
    %v2063 = vsel %vm1999, %v143, -inf
    %v2064 = vsel %vm2000, %v144, -inf
    %v2065 = vsel %vm2001, %v145, -inf
    %v2066 = vsel %vm2002, %v146, -inf
    %v2067 = vsel %vm2003, %v147, -inf
    %v2068 = vsel %vm2004, %v148, -inf
    %v2069 = vsel %vm2005, %v149, -inf
    %v2070 = vsel %vm2006, %v150, -inf
    %v2071 = vsel %vm2007, %v151, -inf
    %v2072 = vsel %vm2008, %v152, -inf
    %v2073 = vsel %vm2009, %v153, -inf
    %2074 = vmax.xlane.f32.xlu0 %v2010
    %v2075 = vpop.xlane.xlu0 %2074
    %2076 = vmax.xlane.f32.xlu0 %v2011
    %v2077 = vpop.xlane.xlu0 %2076
    %2078 = vmax.xlane.f32.xlu0 %v2012
    %v2079 = vpop.xlane.xlu0 %2078
    %2080 = vmax.xlane.f32.xlu0 %v2013
    %v2081 = vpop.xlane.xlu0 %2080
    %2082 = vmax.xlane.f32.xlu0 %v2014
    %v2083 = vpop.xlane.xlu0 %2082
    %2084 = vmax.xlane.f32.xlu0 %v2015
    %v2085 = vpop.xlane.xlu0 %2084
    %2086 = vmax.xlane.f32.xlu0 %v2016
    %v2087 = vpop.xlane.xlu0 %2086
    %2088 = vmax.xlane.f32.xlu0 %v2017
    %v2089 = vpop.xlane.xlu0 %2088
    %2090 = vmax.xlane.f32.xlu0 %v2018
    %v2091 = vpop.xlane.xlu0 %2090
    %2092 = vmax.xlane.f32.xlu0 %v2019
    %v2093 = vpop.xlane.xlu0 %2092
    %2094 = vmax.xlane.f32.xlu0 %v2020
    %v2095 = vpop.xlane.xlu0 %2094
    %2096 = vmax.xlane.f32.xlu0 %v2021
    %v2097 = vpop.xlane.xlu0 %2096
    %2098 = vmax.xlane.f32.xlu0 %v2022
    %v2099 = vpop.xlane.xlu0 %2098
    %2100 = vmax.xlane.f32.xlu0 %v2023
    %v2101 = vpop.xlane.xlu0 %2100
    %2102 = vmax.xlane.f32.xlu0 %v2024
    %v2103 = vpop.xlane.xlu0 %2102
    %2104 = vmax.xlane.f32.xlu0 %v2025
    %v2105 = vpop.xlane.xlu0 %2104
    %2106 = vmax.xlane.f32.xlu0 %v2026
    %v2107 = vpop.xlane.xlu0 %2106
    %2108 = vmax.xlane.f32.xlu0 %v2027
    %v2109 = vpop.xlane.xlu0 %2108
    %2110 = vmax.xlane.f32.xlu0 %v2028
    %v2111 = vpop.xlane.xlu0 %2110
    %2112 = vmax.xlane.f32.xlu0 %v2029
    %v2113 = vpop.xlane.xlu0 %2112
    %2114 = vmax.xlane.f32.xlu0 %v2030
    %v2115 = vpop.xlane.xlu0 %2114
    %2116 = vmax.xlane.f32.xlu0 %v2031
    %v2117 = vpop.xlane.xlu0 %2116
    %2118 = vmax.xlane.f32.xlu0 %v2032
    %v2119 = vpop.xlane.xlu0 %2118
    %2120 = vmax.xlane.f32.xlu0 %v2033
    %v2121 = vpop.xlane.xlu0 %2120
    %2122 = vmax.xlane.f32.xlu0 %v2034
    %v2123 = vpop.xlane.xlu0 %2122
    %2124 = vmax.xlane.f32.xlu0 %v2035
    %v2125 = vpop.xlane.xlu0 %2124
    %2126 = vmax.xlane.f32.xlu0 %v2036
    %v2127 = vpop.xlane.xlu0 %2126
    %2128 = vmax.xlane.f32.xlu0 %v2037
    %v2129 = vpop.xlane.xlu0 %2128
    %2130 = vmax.xlane.f32.xlu0 %v2038
    %v2131 = vpop.xlane.xlu0 %2130
    %2132 = vmax.xlane.f32.xlu0 %v2039
    %v2133 = vpop.xlane.xlu0 %2132
    %2134 = vmax.xlane.f32.xlu0 %v2040
    %v2135 = vpop.xlane.xlu0 %2134
    %2136 = vmax.xlane.f32.xlu0 %v2041
    %v2137 = vpop.xlane.xlu0 %2136
    %2138 = vmax.xlane.f32.xlu0 %v2042
    %v2139 = vpop.xlane.xlu0 %2138
    %2140 = vmax.xlane.f32.xlu0 %v2043
    %v2141 = vpop.xlane.xlu0 %2140
    %2142 = vmax.xlane.f32.xlu0 %v2044
    %v2143 = vpop.xlane.xlu0 %2142
    %2144 = vmax.xlane.f32.xlu0 %v2045
    %v2145 = vpop.xlane.xlu0 %2144
    %2146 = vmax.xlane.f32.xlu0 %v2046
    %v2147 = vpop.xlane.xlu0 %2146
    %2148 = vmax.xlane.f32.xlu0 %v2047
    %v2149 = vpop.xlane.xlu0 %2148
    %2150 = vmax.xlane.f32.xlu0 %v2048
    %v2151 = vpop.xlane.xlu0 %2150
    %2152 = vmax.xlane.f32.xlu0 %v2049
    %v2153 = vpop.xlane.xlu0 %2152
    %2154 = vmax.xlane.f32.xlu0 %v2050
    %v2155 = vpop.xlane.xlu0 %2154
    %2156 = vmax.xlane.f32.xlu0 %v2051
    %v2157 = vpop.xlane.xlu0 %2156
    %2158 = vmax.xlane.f32.xlu0 %v2052
    %v2159 = vpop.xlane.xlu0 %2158
    %2160 = vmax.xlane.f32.xlu0 %v2053
    %v2161 = vpop.xlane.xlu0 %2160
    %2162 = vmax.xlane.f32.xlu0 %v2054
    %v2163 = vpop.xlane.xlu0 %2162
    %2164 = vmax.xlane.f32.xlu0 %v2055
    %v2165 = vpop.xlane.xlu0 %2164
    %2166 = vmax.xlane.f32.xlu0 %v2056
    %v2167 = vpop.xlane.xlu0 %2166
    %2168 = vmax.xlane.f32.xlu0 %v2057
    %v2169 = vpop.xlane.xlu0 %2168
    %2170 = vmax.xlane.f32.xlu0 %v2058
    %v2171 = vpop.xlane.xlu0 %2170
    %2172 = vmax.xlane.f32.xlu0 %v2059
    %v2173 = vpop.xlane.xlu0 %2172
    %2174 = vmax.xlane.f32.xlu0 %v2060
    %v2175 = vpop.xlane.xlu0 %2174
    %2176 = vmax.xlane.f32.xlu0 %v2061
    %v2177 = vpop.xlane.xlu0 %2176
    %2178 = vmax.xlane.f32.xlu0 %v2062
    %v2179 = vpop.xlane.xlu0 %2178
    %2180 = vmax.xlane.f32.xlu0 %v2063
    %v2181 = vpop.xlane.xlu0 %2180
    %2182 = vmax.xlane.f32.xlu0 %v2064
    %v2183 = vpop.xlane.xlu0 %2182
    %2184 = vmax.xlane.f32.xlu0 %v2065
    %v2185 = vpop.xlane.xlu0 %2184
    %2186 = vmax.xlane.f32.xlu0 %v2066
    %v2187 = vpop.xlane.xlu0 %2186
    %2188 = vmax.xlane.f32.xlu0 %v2067
    %v2189 = vpop.xlane.xlu0 %2188
    %2190 = vmax.xlane.f32.xlu0 %v2068
    %v2191 = vpop.xlane.xlu0 %2190
    %2192 = vmax.xlane.f32.xlu0 %v2069
    %v2193 = vpop.xlane.xlu0 %2192
    %2194 = vmax.xlane.f32.xlu0 %v2070
    %v2195 = vpop.xlane.xlu0 %2194
    %2196 = vmax.xlane.f32.xlu0 %v2071
    %v2197 = vpop.xlane.xlu0 %2196
    %2198 = vmax.xlane.f32.xlu0 %v2072
    %v2199 = vpop.xlane.xlu0 %2198
    %2200 = vmax.xlane.f32.xlu0 %v2073
    %v2201 = vpop.xlane.xlu0 %2200
    %vm2202 = vcmp.ge.f32.partialorder %v90, %v2075
    %vm2203 = vcmp.ge.f32.partialorder %v91, %v2077
    %vm2204 = vcmp.ge.f32.partialorder %v92, %v2079
    %vm2205 = vcmp.ge.f32.partialorder %v93, %v2081
    %vm2206 = vcmp.ge.f32.partialorder %v94, %v2083
    %vm2207 = vcmp.ge.f32.partialorder %v95, %v2085
    %vm2208 = vcmp.ge.f32.partialorder %v96, %v2087
    %vm2209 = vcmp.ge.f32.partialorder %v97, %v2089
    %vm2210 = vcmp.ge.f32.partialorder %v98, %v2091
    %vm2211 = vcmp.ge.f32.partialorder %v99, %v2093
    %vm2212 = vcmp.ge.f32.partialorder %v100, %v2095
    %vm2213 = vcmp.ge.f32.partialorder %v101, %v2097
    %vm2214 = vcmp.ge.f32.partialorder %v102, %v2099
    %vm2215 = vcmp.ge.f32.partialorder %v103, %v2101
    %vm2216 = vcmp.ge.f32.partialorder %v104, %v2103
    %vm2217 = vcmp.ge.f32.partialorder %v105, %v2105
    %vm2218 = vcmp.ge.f32.partialorder %v106, %v2107
    %vm2219 = vcmp.ge.f32.partialorder %v107, %v2109
    %vm2220 = vcmp.ge.f32.partialorder %v108, %v2111
    %vm2221 = vcmp.ge.f32.partialorder %v109, %v2113
    %vm2222 = vcmp.ge.f32.partialorder %v110, %v2115
    %vm2223 = vcmp.ge.f32.partialorder %v111, %v2117
    %vm2224 = vcmp.ge.f32.partialorder %v112, %v2119
    %vm2225 = vcmp.ge.f32.partialorder %v113, %v2121
    %vm2226 = vcmp.ge.f32.partialorder %v114, %v2123
    %vm2227 = vcmp.ge.f32.partialorder %v115, %v2125
    %vm2228 = vcmp.ge.f32.partialorder %v116, %v2127
    %vm2229 = vcmp.ge.f32.partialorder %v117, %v2129
    %vm2230 = vcmp.ge.f32.partialorder %v118, %v2131
    %vm2231 = vcmp.ge.f32.partialorder %v119, %v2133
    %vm2232 = vcmp.ge.f32.partialorder %v120, %v2135
    %vm2233 = vcmp.ge.f32.partialorder %v121, %v2137
    %vm2234 = vcmp.ge.f32.partialorder %v122, %v2139
    %vm2235 = vcmp.ge.f32.partialorder %v123, %v2141
    %vm2236 = vcmp.ge.f32.partialorder %v124, %v2143
    %vm2237 = vcmp.ge.f32.partialorder %v125, %v2145
    %vm2238 = vcmp.ge.f32.partialorder %v126, %v2147
    %vm2239 = vcmp.ge.f32.partialorder %v127, %v2149
    %vm2240 = vcmp.ge.f32.partialorder %v128, %v2151
    %vm2241 = vcmp.ge.f32.partialorder %v129, %v2153
    %vm2242 = vcmp.ge.f32.partialorder %v130, %v2155
    %vm2243 = vcmp.ge.f32.partialorder %v131, %v2157
    %vm2244 = vcmp.ge.f32.partialorder %v132, %v2159
    %vm2245 = vcmp.ge.f32.partialorder %v133, %v2161
    %vm2246 = vcmp.ge.f32.partialorder %v134, %v2163
    %vm2247 = vcmp.ge.f32.partialorder %v135, %v2165
    %vm2248 = vcmp.ge.f32.partialorder %v136, %v2167
    %vm2249 = vcmp.ge.f32.partialorder %v137, %v2169
    %vm2250 = vcmp.ge.f32.partialorder %v138, %v2171
    %vm2251 = vcmp.ge.f32.partialorder %v139, %v2173
    %vm2252 = vcmp.ge.f32.partialorder %v140, %v2175
    %vm2253 = vcmp.ge.f32.partialorder %v141, %v2177
    %vm2254 = vcmp.ge.f32.partialorder %v142, %v2179
    %vm2255 = vcmp.ge.f32.partialorder %v143, %v2181
    %vm2256 = vcmp.ge.f32.partialorder %v144, %v2183
    %vm2257 = vcmp.ge.f32.partialorder %v145, %v2185
    %vm2258 = vcmp.ge.f32.partialorder %v146, %v2187
    %vm2259 = vcmp.ge.f32.partialorder %v147, %v2189
    %vm2260 = vcmp.ge.f32.partialorder %v148, %v2191
    %vm2261 = vcmp.ge.f32.partialorder %v149, %v2193
    %vm2262 = vcmp.ge.f32.partialorder %v150, %v2195
    %vm2263 = vcmp.ge.f32.partialorder %v151, %v2197
    %vm2264 = vcmp.ge.f32.partialorder %v152, %v2199
    %vm2265 = vcmp.ge.f32.partialorder %v153, %v2201
    %v2266 = vsel %vm2202, %v23, 0.0
    %v2267 = vsel %vm2203, %v24, 0.0
    %v2268 = vsel %vm2204, %v25, 0.0
    %v2269 = vsel %vm2205, %v26, 0.0
    %v2270 = vsel %vm2206, %v27, 0.0
    %v2271 = vsel %vm2207, %v28, 0.0
    %v2272 = vsel %vm2208, %v29, 0.0
    %v2273 = vsel %vm2209, %v30, 0.0
    %v2274 = vsel %vm2210, %v31, 0.0
    %v2275 = vsel %vm2211, %v32, 0.0
    %v2276 = vsel %vm2212, %v33, 0.0
    %v2277 = vsel %vm2213, %v34, 0.0
    %v2278 = vsel %vm2214, %v35, 0.0
    %v2279 = vsel %vm2215, %v36, 0.0
    %v2280 = vsel %vm2216, %v37, 0.0
    %v2281 = vsel %vm2217, %v38, 0.0
    %v2282 = vsel %vm2218, %v39, 0.0
    %v2283 = vsel %vm2219, %v40, 0.0
    %v2284 = vsel %vm2220, %v41, 0.0
    %v2285 = vsel %vm2221, %v42, 0.0
    %v2286 = vsel %vm2222, %v43, 0.0
    %v2287 = vsel %vm2223, %v44, 0.0
    %v2288 = vsel %vm2224, %v45, 0.0
    %v2289 = vsel %vm2225, %v46, 0.0
    %v2290 = vsel %vm2226, %v47, 0.0
    %v2291 = vsel %vm2227, %v48, 0.0
    %v2292 = vsel %vm2228, %v49, 0.0
    %v2293 = vsel %vm2229, %v50, 0.0
    %v2294 = vsel %vm2230, %v51, 0.0
    %v2295 = vsel %vm2231, %v52, 0.0
    %v2296 = vsel %vm2232, %v53, 0.0
    %v2297 = vsel %vm2233, %v54, 0.0
    %v2298 = vsel %vm2234, %v55, 0.0
    %v2299 = vsel %vm2235, %v56, 0.0
    %v2300 = vsel %vm2236, %v57, 0.0
    %v2301 = vsel %vm2237, %v58, 0.0
    %v2302 = vsel %vm2238, %v59, 0.0
    %v2303 = vsel %vm2239, %v60, 0.0
    %v2304 = vsel %vm2240, %v61, 0.0
    %v2305 = vsel %vm2241, %v62, 0.0
    %v2306 = vsel %vm2242, %v63, 0.0
    %v2307 = vsel %vm2243, %v64, 0.0
    %v2308 = vsel %vm2244, %v65, 0.0
    %v2309 = vsel %vm2245, %v66, 0.0
    %v2310 = vsel %vm2246, %v67, 0.0
    %v2311 = vsel %vm2247, %v68, 0.0
    %v2312 = vsel %vm2248, %v69, 0.0
    %v2313 = vsel %vm2249, %v70, 0.0
    %v2314 = vsel %vm2250, %v71, 0.0
    %v2315 = vsel %vm2251, %v72, 0.0
    %v2316 = vsel %vm2252, %v73, 0.0
    %v2317 = vsel %vm2253, %v74, 0.0
    %v2318 = vsel %vm2254, %v75, 0.0
    %v2319 = vsel %vm2255, %v76, 0.0
    %v2320 = vsel %vm2256, %v77, 0.0
    %v2321 = vsel %vm2257, %v78, 0.0
    %v2322 = vsel %vm2258, %v79, 0.0
    %v2323 = vsel %vm2259, %v80, 0.0
    %v2324 = vsel %vm2260, %v81, 0.0
    %v2325 = vsel %vm2261, %v82, 0.0
    %v2326 = vsel %vm2262, %v83, 0.0
    %v2327 = vsel %vm2263, %v84, 0.0
    %v2328 = vsel %vm2264, %v85, 0.0
    %v2329 = vsel %vm2265, %v86, 0.0
    %v2330 = vpack.c.bf16 %v2267, %v2266
    %v2331 = vpack.c.bf16 %v2269, %v2268
    %v2332 = vpack.c.bf16 %v2271, %v2270
    %v2333 = vpack.c.bf16 %v2273, %v2272
    %v2334 = vpack.c.bf16 %v2275, %v2274
    %v2335 = vpack.c.bf16 %v2277, %v2276
    %v2336 = vpack.c.bf16 %v2279, %v2278
    %v2337 = vpack.c.bf16 %v2281, %v2280
    %v2338 = vpack.c.bf16 %v2283, %v2282
    %v2339 = vpack.c.bf16 %v2285, %v2284
    %v2340 = vpack.c.bf16 %v2287, %v2286
    %v2341 = vpack.c.bf16 %v2289, %v2288
    %v2342 = vpack.c.bf16 %v2291, %v2290
    %v2343 = vpack.c.bf16 %v2293, %v2292
    %v2344 = vpack.c.bf16 %v2295, %v2294
    %v2345 = vpack.c.bf16 %v2297, %v2296
    %v2346 = vpack.c.bf16 %v2299, %v2298
    %v2347 = vpack.c.bf16 %v2301, %v2300
    %v2348 = vpack.c.bf16 %v2303, %v2302
    %v2349 = vpack.c.bf16 %v2305, %v2304
    %v2350 = vpack.c.bf16 %v2307, %v2306
    %v2351 = vpack.c.bf16 %v2309, %v2308
    %v2352 = vpack.c.bf16 %v2311, %v2310
    %v2353 = vpack.c.bf16 %v2313, %v2312
    %v2354 = vpack.c.bf16 %v2315, %v2314
    %v2355 = vpack.c.bf16 %v2317, %v2316
    %v2356 = vpack.c.bf16 %v2319, %v2318
    %v2357 = vpack.c.bf16 %v2321, %v2320
    %v2358 = vpack.c.bf16 %v2323, %v2322
    %v2359 = vpack.c.bf16 %v2325, %v2324
    %v2360 = vpack.c.bf16 %v2327, %v2326
    %v2361 = vpack.c.bf16 %v2329, %v2328
    %v2394 = vunpack.c.l.b16 %v2330
    %v2395 = vunpack.c.h.b16 %v2330
    %v2396 = vunpack.c.l.b16 %v2331
    %v2397 = vunpack.c.h.b16 %v2331
    %v2398 = vunpack.c.l.b16 %v2332
    %v2399 = vunpack.c.h.b16 %v2332
    %v2400 = vunpack.c.l.b16 %v2333
    %v2401 = vunpack.c.h.b16 %v2333
    %v2402 = vunpack.c.l.b16 %v2334
    %v2403 = vunpack.c.h.b16 %v2334
    %v2404 = vunpack.c.l.b16 %v2335
    %v2405 = vunpack.c.h.b16 %v2335
    %v2406 = vunpack.c.l.b16 %v2336
    %v2407 = vunpack.c.h.b16 %v2336
    %v2408 = vunpack.c.l.b16 %v2337
    %v2409 = vunpack.c.h.b16 %v2337
    %v2410 = vunpack.c.l.b16 %v2338
    %v2411 = vunpack.c.h.b16 %v2338
    %v2412 = vunpack.c.l.b16 %v2339
    %v2413 = vunpack.c.h.b16 %v2339
    %v2414 = vunpack.c.l.b16 %v2340
    %v2415 = vunpack.c.h.b16 %v2340
    %v2416 = vunpack.c.l.b16 %v2341
    %v2417 = vunpack.c.h.b16 %v2341
    %v2418 = vunpack.c.l.b16 %v2342
    %v2419 = vunpack.c.h.b16 %v2342
    %v2420 = vunpack.c.l.b16 %v2343
    %v2421 = vunpack.c.h.b16 %v2343
    %v2422 = vunpack.c.l.b16 %v2344
    %v2423 = vunpack.c.h.b16 %v2344
    %v2424 = vunpack.c.l.b16 %v2345
    %v2425 = vunpack.c.h.b16 %v2345
    %v2426 = vunpack.c.l.b16 %v2346
    %v2427 = vunpack.c.h.b16 %v2346
    %v2428 = vunpack.c.l.b16 %v2347
    %v2429 = vunpack.c.h.b16 %v2347
    %v2430 = vunpack.c.l.b16 %v2348
    %v2431 = vunpack.c.h.b16 %v2348
    %v2432 = vunpack.c.l.b16 %v2349
    %v2433 = vunpack.c.h.b16 %v2349
    %v2434 = vunpack.c.l.b16 %v2350
    %v2435 = vunpack.c.h.b16 %v2350
    %v2436 = vunpack.c.l.b16 %v2351
    %v2437 = vunpack.c.h.b16 %v2351
    %v2438 = vunpack.c.l.b16 %v2352
    %v2439 = vunpack.c.h.b16 %v2352
    %v2440 = vunpack.c.l.b16 %v2353
    %v2441 = vunpack.c.h.b16 %v2353
    %v2442 = vunpack.c.l.b16 %v2354
    %v2443 = vunpack.c.h.b16 %v2354
    %v2444 = vunpack.c.l.b16 %v2355
    %v2445 = vunpack.c.h.b16 %v2355
    %v2446 = vunpack.c.l.b16 %v2356
    %v2447 = vunpack.c.h.b16 %v2356
    %v2448 = vunpack.c.l.b16 %v2357
    %v2449 = vunpack.c.h.b16 %v2357
    %v2450 = vunpack.c.l.b16 %v2358
    %v2451 = vunpack.c.h.b16 %v2358
    %v2452 = vunpack.c.l.b16 %v2359
    %v2453 = vunpack.c.h.b16 %v2359
    %v2454 = vunpack.c.l.b16 %v2360
    %v2455 = vunpack.c.h.b16 %v2360
    %v2456 = vunpack.c.l.b16 %v2361
    %v2457 = vunpack.c.h.b16 %v2361
    %v2458 = vpack.c.b16 %v2394, %v2394
    %v2459 = vpack.c.b16 %v2395, %v2395
    %v2460 = vpack.c.b16 %v2396, %v2396
    %v2461 = vpack.c.b16 %v2397, %v2397
    %v2462 = vpack.c.b16 %v2398, %v2398
    %v2463 = vpack.c.b16 %v2399, %v2399
    %v2464 = vpack.c.b16 %v2400, %v2400
    %v2465 = vpack.c.b16 %v2401, %v2401
    %v2466 = vpack.c.b16 %v2402, %v2402
    %v2467 = vpack.c.b16 %v2403, %v2403
    %v2468 = vpack.c.b16 %v2404, %v2404
    %v2469 = vpack.c.b16 %v2405, %v2405
    %v2470 = vpack.c.b16 %v2406, %v2406
    %v2471 = vpack.c.b16 %v2407, %v2407
    %v2472 = vpack.c.b16 %v2408, %v2408
    %v2473 = vpack.c.b16 %v2409, %v2409
    %v2474 = vpack.c.b16 %v2410, %v2410
    %v2475 = vpack.c.b16 %v2411, %v2411
    %v2476 = vpack.c.b16 %v2412, %v2412
    %v2477 = vpack.c.b16 %v2413, %v2413
    %v2478 = vpack.c.b16 %v2414, %v2414
    %v2479 = vpack.c.b16 %v2415, %v2415
    %v2480 = vpack.c.b16 %v2416, %v2416
    %v2481 = vpack.c.b16 %v2417, %v2417
    %v2482 = vpack.c.b16 %v2418, %v2418
    %v2483 = vpack.c.b16 %v2419, %v2419
    %v2484 = vpack.c.b16 %v2420, %v2420
    %v2485 = vpack.c.b16 %v2421, %v2421
    %v2486 = vpack.c.b16 %v2422, %v2422
    %v2487 = vpack.c.b16 %v2423, %v2423
    %v2488 = vpack.c.b16 %v2424, %v2424
    %v2489 = vpack.c.b16 %v2425, %v2425
    %v2490 = vpack.c.b16 %v2426, %v2426
    %v2491 = vpack.c.b16 %v2427, %v2427
    %v2492 = vpack.c.b16 %v2428, %v2428
    %v2493 = vpack.c.b16 %v2429, %v2429
    %v2494 = vpack.c.b16 %v2430, %v2430
    %v2495 = vpack.c.b16 %v2431, %v2431
    %v2496 = vpack.c.b16 %v2432, %v2432
    %v2497 = vpack.c.b16 %v2433, %v2433
    %v2498 = vpack.c.b16 %v2434, %v2434
    %v2499 = vpack.c.b16 %v2435, %v2435
    %v2500 = vpack.c.b16 %v2436, %v2436
    %v2501 = vpack.c.b16 %v2437, %v2437
    %v2502 = vpack.c.b16 %v2438, %v2438
    %v2503 = vpack.c.b16 %v2439, %v2439
    %v2504 = vpack.c.b16 %v2440, %v2440
    %v2505 = vpack.c.b16 %v2441, %v2441
    %v2506 = vpack.c.b16 %v2442, %v2442
    %v2507 = vpack.c.b16 %v2443, %v2443
    %v2508 = vpack.c.b16 %v2444, %v2444
    %v2509 = vpack.c.b16 %v2445, %v2445
    %v2510 = vpack.c.b16 %v2446, %v2446
    %v2511 = vpack.c.b16 %v2447, %v2447
    %v2512 = vpack.c.b16 %v2448, %v2448
    %v2513 = vpack.c.b16 %v2449, %v2449
    %v2514 = vpack.c.b16 %v2450, %v2450
    %v2515 = vpack.c.b16 %v2451, %v2451
    %v2516 = vpack.c.b16 %v2452, %v2452
    %v2517 = vpack.c.b16 %v2453, %v2453
    %v2518 = vpack.c.b16 %v2454, %v2454
    %v2519 = vpack.c.b16 %v2455, %v2455
    %v2520 = vpack.c.b16 %v2456, %v2456
    %v2521 = vpack.c.b16 %v2457, %v2457
    %2586 = vst [vmem:[#allocation5] sm:$0xf] %v2458
    %2587 = vst [vmem:[#allocation5 + $0x4] sm:$0xf] %v2459
    %2588 = vst [vmem:[#allocation5 + $0x8] sm:$0xf] %v2460
    %2589 = vst [vmem:[#allocation5 + $0xc] sm:$0xf] %v2461
    %2590 = vst [vmem:[#allocation5 + $0x10] sm:$0xf] %v2462
    %2591 = vst [vmem:[#allocation5 + $0x14] sm:$0xf] %v2463
    %2592 = vst [vmem:[#allocation5 + $0x18] sm:$0xf] %v2464
    %2593 = vst [vmem:[#allocation5 + $0x1c] sm:$0xf] %v2465
    %2594 = vst [vmem:[#allocation5 + $0x20] sm:$0xf] %v2466
    %2595 = vst [vmem:[#allocation5 + $0x24] sm:$0xf] %v2467
    %2596 = vst [vmem:[#allocation5 + $0x28] sm:$0xf] %v2468
    %2597 = vst [vmem:[#allocation5 + $0x2c] sm:$0xf] %v2469
    %2598 = vst [vmem:[#allocation5 + $0x30] sm:$0xf] %v2470
    %2599 = vst [vmem:[#allocation5 + $0x34] sm:$0xf] %v2471
    %2600 = vst [vmem:[#allocation5 + $0x38] sm:$0xf] %v2472
    %2601 = vst [vmem:[#allocation5 + $0x3c] sm:$0xf] %v2473
    %2602 = vst [vmem:[#allocation5 + $0x40] sm:$0xf] %v2474
    %2603 = vst [vmem:[#allocation5 + $0x44] sm:$0xf] %v2475
    %2604 = vst [vmem:[#allocation5 + $0x48] sm:$0xf] %v2476
    %2605 = vst [vmem:[#allocation5 + $0x4c] sm:$0xf] %v2477
    %2606 = vst [vmem:[#allocation5 + $0x50] sm:$0xf] %v2478
    %2607 = vst [vmem:[#allocation5 + $0x54] sm:$0xf] %v2479
    %2608 = vst [vmem:[#allocation5 + $0x58] sm:$0xf] %v2480
    %2609 = vst [vmem:[#allocation5 + $0x5c] sm:$0xf] %v2481
    %2610 = vst [vmem:[#allocation5 + $0x60] sm:$0xf] %v2482
    %2611 = vst [vmem:[#allocation5 + $0x64] sm:$0xf] %v2483
    %2612 = vst [vmem:[#allocation5 + $0x68] sm:$0xf] %v2484
    %2613 = vst [vmem:[#allocation5 + $0x6c] sm:$0xf] %v2485
    %2614 = vst [vmem:[#allocation5 + $0x70] sm:$0xf] %v2486
    %2615 = vst [vmem:[#allocation5 + $0x74] sm:$0xf] %v2487
    %2616 = vst [vmem:[#allocation5 + $0x78] sm:$0xf] %v2488
    %2617 = vst [vmem:[#allocation5 + $0x7c] sm:$0xf] %v2489
    %2618 = vst [vmem:[#allocation5 + $0x80] sm:$0xf] %v2490
    %2619 = vst [vmem:[#allocation5 + $0x84] sm:$0xf] %v2491
    %2620 = vst [vmem:[#allocation5 + $0x88] sm:$0xf] %v2492
    %2621 = vst [vmem:[#allocation5 + $0x8c] sm:$0xf] %v2493
    %2622 = vst [vmem:[#allocation5 + $0x90] sm:$0xf] %v2494
    %2623 = vst [vmem:[#allocation5 + $0x94] sm:$0xf] %v2495
    %2624 = vst [vmem:[#allocation5 + $0x98] sm:$0xf] %v2496
    %2625 = vst [vmem:[#allocation5 + $0x9c] sm:$0xf] %v2497
    %2626 = vst [vmem:[#allocation5 + $0xa0] sm:$0xf] %v2498
    %2627 = vst [vmem:[#allocation5 + $0xa4] sm:$0xf] %v2499
    %2628 = vst [vmem:[#allocation5 + $0xa8] sm:$0xf] %v2500
    %2629 = vst [vmem:[#allocation5 + $0xac] sm:$0xf] %v2501
    %2630 = vst [vmem:[#allocation5 + $0xb0] sm:$0xf] %v2502
    %2631 = vst [vmem:[#allocation5 + $0xb4] sm:$0xf] %v2503
    %2632 = vst [vmem:[#allocation5 + $0xb8] sm:$0xf] %v2504
    %2633 = vst [vmem:[#allocation5 + $0xbc] sm:$0xf] %v2505
    %2634 = vst [vmem:[#allocation5 + $0xc0] sm:$0xf] %v2506
    %2635 = vst [vmem:[#allocation5 + $0xc4] sm:$0xf] %v2507
    %2636 = vst [vmem:[#allocation5 + $0xc8] sm:$0xf] %v2508
    %2637 = vst [vmem:[#allocation5 + $0xcc] sm:$0xf] %v2509
    %2638 = vst [vmem:[#allocation5 + $0xd0] sm:$0xf] %v2510
    %2639 = vst [vmem:[#allocation5 + $0xd4] sm:$0xf] %v2511
    %2640 = vst [vmem:[#allocation5 + $0xd8] sm:$0xf] %v2512
    %2641 = vst [vmem:[#allocation5 + $0xdc] sm:$0xf] %v2513
    %2642 = vst [vmem:[#allocation5 + $0xe0] sm:$0xf] %v2514
    %2643 = vst [vmem:[#allocation5 + $0xe4] sm:$0xf] %v2515
    %2644 = vst [vmem:[#allocation5 + $0xe8] sm:$0xf] %v2516
    %2645 = vst [vmem:[#allocation5 + $0xec] sm:$0xf] %v2517
    %2646 = vst [vmem:[#allocation5 + $0xf0] sm:$0xf] %v2518
    %2647 = vst [vmem:[#allocation5 + $0xf4] sm:$0xf] %v2519
    %2648 = vst [vmem:[#allocation5 + $0xf8] sm:$0xf] %v2520
    %2649 = vst [vmem:[#allocation5 + $0xfc] sm:$0xf] %v2521
    // Predicated region
    $region10: #{tpu_custom_call.1} parent=1 // pred_check
      _
    $region11: #{tpu_custom_call.1} parent=1 // pred_check_branch
      %2651 = sbr.rel (0) target = $region13
    $region12: #{tpu_custom_call.1} parent=1 // pred_region
      %s2653 = ssub.s32 4096, 4096
      %2654 = vsyncadd [#allocation4], %s2653
      %s2655 = sshll.u32 [#allocation5], 4
      %s2656 = int_to_ptr.vmem [resolvable:$true] %s2655
      %2661 = dma.vmem_to_hbm [thread:$0]  %s2656, 4096, %s1, [#allocation4], 64, 64, 4
    $region13: #{tpu_custom_call.1} parent=1 // pred_fallthru
      _
    // Predicated region
    $region14: #{tpu_custom_call.1} parent=1 // pred_check
      _
    $region15: #{tpu_custom_call.1} parent=1 // pred_check_branch
      %2663 = sbr.rel (0) target = $region17
    $region16: #{tpu_custom_call.1} parent=1 // pred_region
      %2664 = dma.done [#allocation4], 4096
    $region17: #{tpu_custom_call.1} parent=1 // pred_fallthru
      _
    %2665 = vsyncpa [#allocation3], 1
    %2666 = vsyncpa [#allocation4], 1

</llo_original>
